<compile_context>
chip_gen: v7x
topology: tpu7x:2x2x1
jax: 0.10.0
libtpu: 0.0.40
codegen_flags: <defaults>
</compile_context>

<pallas_src>
import functools
import math

import jax
import jax.numpy as jnp
import numpy as np
from jax.experimental import pallas as pl
from jax.experimental.pallas import tpu as pltpu


def _round_up(x: int, m: int) -> int:
    return (x + m - 1) // m * m


def _pick_vmem_limit() -> int:
    # v7x: 64 MiB physical VMEM per core -> cap ~48 MiB; v5e/v6e: 128 MiB -> 96 MiB.
    try:
        cap = int(pltpu.get_tpu_info().vmem_capacity_bytes)
        return max(32 << 20, min(96 << 20, (cap * 3) // 4))
    except Exception:
        return 48 << 20


# ----------------------------------------------------------------------------
# Pallas kernel
# ----------------------------------------------------------------------------
def _make_kernel(*, num_heads, embed_dim, seq_len, t_pad, block_b, has_attn_mask):
    H, D, S, Tp, Bt = num_heads, embed_dim, seq_len, t_pad, block_b
    hd = D // H
    scale = 1.0 / math.sqrt(hd)
    N = Bt * Tp                      # flattened (batch-block * padded-seq) rows
    pad_rows = Tp - 1 - S            # zero rows appended after cls + S tokens

    def _layernorm(x, g, b, eps=1e-5):
        mu = jnp.mean(x, axis=-1, keepdims=True)
        var = jnp.mean((x - mu) ** 2, axis=-1, keepdims=True)
        return (x - mu) * jax.lax.rsqrt(var + eps) * g + b

    def kernel(x_ref, cls_ref, kbias_ref, pre_g_ref, pre_b_ref,
               wqkv_ref, wops_ref, vec_ref, *rest):
        if has_attn_mask:
            am_ref, out_ref, seq_sc = rest
        else:
            out_ref, seq_sc = rest

        l = pl.program_id(1)
        last = pl.num_programs(1) - 1

        # ---- layer 0: (cls | pre-LN(x) | zero pad) via 3 whole-slab stores ----
        @pl.when(l == 0)
        def _():
            xn = _layernorm(x_ref[...], pre_g_ref[...], pre_b_ref[...])  # (Bt,S,D)
            seq_sc[:, 0:1, :] = jnp.broadcast_to(cls_ref[...][None, :, :],
                                                 (Bt, 1, D))
            seq_sc[:, 1:1 + S, :] = xn
            if pad_rows > 0:
                seq_sc[:, 1 + S:Tp, :] = jnp.zeros((Bt, pad_rows, D), jnp.float32)

        # packed per-layer vectors: rows = bq,bk,bv,bo,b1,b2,n1g,n1b,n2g,n2b
        vec = vec_ref[0]                                    # (10, D) f32
        w_all = wops_ref[0]                                 # (3, D, D) bf16: wo,w1,w2

        seqf = seq_sc[...].reshape(N, D)                    # (N, D) f32 running state
        seqb = seqf.astype(jnp.bfloat16)

        # ---- fused QKV (one MXU push, bf16 in / f32 accumulate) ---------------
        qkv = jnp.dot(seqb, wqkv_ref[0], preferred_element_type=jnp.float32)
        q = qkv[:, 0:D] + vec[0:1, :]
        k = qkv[:, D:2 * D] + vec[1:2, :]
        v = qkv[:, 2 * D:3 * D] + vec[2:3, :]

        # key-padding bias row broadcast over the query axis (no (T,T) in HBM)
        bias = kbias_ref[...]                               # (Bt, 1, Tp)
        if has_attn_mask:
            bias = bias + am_ref[...]                       # + (1, Tp, Tp)

        # ---- attention: per head, fold output projection into an accumulator --
        wo = w_all[0]
        acc = jnp.zeros((N, D), jnp.float32)
        for h in range(H):
            lo = h * hd
            qh = q[:, lo:lo + hd].reshape(Bt, Tp, hd).astype(jnp.bfloat16)
            kh = k[:, lo:lo + hd].reshape(Bt, Tp, hd).astype(jnp.bfloat16)
            vh = v[:, lo:lo + hd].reshape(Bt, Tp, hd).astype(jnp.bfloat16)
            s = jnp.einsum("bqd,bkd->bqk", qh, kh,
                           preferred_element_type=jnp.float32) * scale + bias
            s = s - jnp.max(s, axis=-1, keepdims=True)
            p = jnp.exp(s)
            p = p * pl.reciprocal(jnp.sum(p, axis=-1, keepdims=True), approx=True)
            o = jnp.einsum("bqk,bkd->bqd", p.astype(jnp.bfloat16), vh,
                           preferred_element_type=jnp.float32)   # (Bt,Tp,hd)
            acc = acc + jnp.dot(o.reshape(N, hd).astype(jnp.bfloat16),
                                wo[lo:lo + hd, :],
                                preferred_element_type=jnp.float32)
        attn = acc + vec[3:4, :]                            # + bo

        # ---- residual + norm1 -------------------------------------------------
        seqf = _layernorm(seqf + attn, vec[6:7, :], vec[7:8, :])

        # ---- feed forward (Linear -> ReLU -> Linear) ---------------------------
        ff = jnp.dot(seqf.astype(jnp.bfloat16), w_all[1],
                     preferred_element_type=jnp.float32) + vec[4:5, :]
        ff = jnp.maximum(ff, 0.0)
        ff = jnp.dot(ff.astype(jnp.bfloat16), w_all[2],
                     preferred_element_type=jnp.float32) + vec[5:6, :]

        # ---- residual + norm2 -------------------------------------------------
        seqf = _layernorm(seqf + ff, vec[8:9, :], vec[9:10, :])
        seq_new = seqf.reshape(Bt, Tp, D)

        @pl.when(l < last)
        def _():
            seq_sc[...] = seq_new                           # carry to next layer

        @pl.when(l == last)
        def _():
            out_ref[...] = seq_new

    return kernel


# ----------------------------------------------------------------------------
# Wrapper
# ----------------------------------------------------------------------------
def vit1d_forward(x, key_padding_mask, params, *, num_heads, attn_mask=None,
                  block_b=None):
    """Returns (cls_tokens (B,D), emb (B,S,D)) like ViT1D.forward."""
    B, S, D = x.shape
    T = S + 1
    Tp = _round_up(T, 8)                 # pad token axis to full sublane tiles
    L = params["wq"].shape[0]

    # Batch-block size: target N = Bt*Tp >= 256 rows per grid step, but keep at
    # least 2 batch blocks (when B >= 2) so the "parallel" axis can shard across
    # both TensorCores on v7x.
    if block_b is None:
        block_b = max(1, 256 // Tp)
    Bt = max(1, min(block_b, B))
    if B >= 2 and -(-B // Bt) < 2:
        Bt = -(-B // 2)
    B_pad = _round_up(B, Bt)
    nb = B_pad // Bt

    if B_pad != B:
        x = jnp.concatenate([x, jnp.zeros((B_pad - B, S, D), x.dtype)], axis=0)
        key_padding_mask = jnp.concatenate(
            [key_padding_mask, jnp.zeros((B_pad - B, S), dtype=bool)], axis=0)

    # (B_pad, 1, Tp) additive key bias: col 0 = cls (never masked), cols 1..S
    # from key_padding_mask, cols T..Tp-1 = token-padding slots (always masked).
    neg = jnp.float32(-1e30)
    kbias = jnp.concatenate(
        [jnp.zeros((B_pad, 1), jnp.float32),
         jnp.where(key_padding_mask, neg, jnp.float32(0.0)),
         jnp.full((B_pad, Tp - T), neg, jnp.float32)], axis=1)[:, None, :]

    has_attn_mask = attn_mask is not None
    if has_attn_mask:
        am = jnp.zeros((1, Tp, Tp), jnp.float32).at[0, :T, :T].set(
            attn_mask.astype(jnp.float32))

    # Fused / packed per-layer parameters (bf16 matmul weights, f32 vectors).
    wqkv = jnp.concatenate([params["wq"], params["wk"], params["wv"]],
                           axis=-1).astype(jnp.bfloat16)              # (L, D, 3D)
    wops = jnp.stack([params["wo"], params["w1"], params["w2"]],
                     axis=1).astype(jnp.bfloat16)                     # (L, 3, D, D)
    vecs = jnp.concatenate(
        [params["bq"], params["bk"], params["bv"], params["bo"],
         params["b1"], params["b2"], params["n1g"], params["n1b"],
         params["n2g"], params["n2b"]], axis=1).astype(jnp.float32)   # (L, 10, D)

    kernel = _make_kernel(num_heads=num_heads, embed_dim=D, seq_len=S,
                          t_pad=Tp, block_b=Bt, has_attn_mask=has_attn_mask)

    c_spec = pl.BlockSpec((1, D), lambda i, l: (0, 0))
    in_specs = [
        pl.BlockSpec((Bt, S, D), lambda i, l: (i, 0, 0)),          # x
        c_spec,                                                    # cls
        pl.BlockSpec((Bt, 1, Tp), lambda i, l: (i, 0, 0)),         # key bias row
        c_spec, c_spec,                                            # pre_g, pre_b
        pl.BlockSpec((1, D, 3 * D), lambda i, l: (l, 0, 0)),       # fused wqkv
        pl.BlockSpec((1, 3, D, D), lambda i, l: (l, 0, 0, 0)),     # wo|w1|w2
        pl.BlockSpec((1, 10, D), lambda i, l: (l, 0, 0)),          # packed vectors
    ]
    inputs = [x, params["cls"], kbias, params["pre_g"], params["pre_b"],
              wqkv, wops, vecs]
    if has_attn_mask:
        in_specs.append(pl.BlockSpec((1, Tp, Tp), lambda i, l: (0, 0, 0)))
        inputs.append(am)

    # Advisory cost estimate so XLA schedules the wrapper-side ops around us.
    N = Bt * Tp
    flops = int(nb * L * (2 * N * D * 3 * D + 4 * Bt * Tp * Tp * D
                          + 6 * N * D * D))
    transcend = int(nb * L * num_heads * Bt * Tp * (Tp + 1))
    bytes_acc = int(B_pad * S * D * 4 + B_pad * Tp * D * 4 + B_pad * Tp * 4
                    + nb * L * (D * 3 * D * 2 + 3 * D * D * 2 + 10 * D * 4))

    out = pl.pallas_call(
        kernel,
        out_shape=jax.ShapeDtypeStruct((B_pad, Tp, D), jnp.float32),
        grid=(nb, L),
        in_specs=in_specs,
        out_specs=pl.BlockSpec((Bt, Tp, D), lambda i, l: (i, 0, 0)),
        scratch_shapes=[pltpu.VMEM((Bt, Tp, D), jnp.float32)],     # layer carry
        compiler_params=pltpu.CompilerParams(
            dimension_semantics=("parallel", "arbitrary"),
            vmem_limit_bytes=_pick_vmem_limit()),
        cost_estimate=pl.CostEstimate(flops=flops, transcendentals=transcend,
                                      bytes_accessed=bytes_acc),
    )(*inputs)

    return out[:B, 0], out[:B, 1:T]


# ----------------------------------------------------------------------------
# Pure-JAX reference (mirrors PyTorch semantics) for a sanity check
# ----------------------------------------------------------------------------
def reference_forward(x, key_padding_mask, params, *, num_heads, attn_mask=None):
    B, S, D = x.shape
    T = S + 1
    H = num_heads
    hd = D // H
    scale = 1.0 / math.sqrt(hd)
    L = params["wq"].shape[0]
    ein = functools.partial(jnp.einsum, precision=jax.lax.Precision.HIGHEST)

    def ln(v, g, b, eps=1e-5):
        mu = v.mean(-1, keepdims=True)
        var = ((v - mu) ** 2).mean(-1, keepdims=True)
        return (v - mu) / jnp.sqrt(var + eps) * g + b

    kpm = jnp.concatenate([jnp.zeros((B, 1), dtype=bool), key_padding_mask], axis=1)
    bias = jnp.where(kpm, -1e30, 0.0)[:, None, None, :]        # (B,1,1,T)
    if attn_mask is not None:
        bias = bias + attn_mask[None, None].astype(jnp.float32)

    xn = ln(x, params["pre_g"], params["pre_b"])
    cls = jnp.broadcast_to(params["cls"][None], (B, 1, D))
    seq = jnp.concatenate([cls, xn], axis=1)                    # (B, T, D)

    for l in range(L):
        q = ein("btd,de->bte", seq, params["wq"][l]) + params["bq"][l]
        k = ein("btd,de->bte", seq, params["wk"][l]) + params["bk"][l]
        v = ein("btd,de->bte", seq, params["wv"][l]) + params["bv"][l]
        q = q.reshape(B, T, H, hd)
        k = k.reshape(B, T, H, hd)
        v = v.reshape(B, T, H, hd)
        s = ein("bqhd,bkhd->bhqk", q, k) * scale + bias
        p = jax.nn.softmax(s, axis=-1)
        o = ein("bhqk,bkhd->bqhd", p, v).reshape(B, T, D)
        attn = ein("btd,de->bte", o, params["wo"][l]) + params["bo"][l]
        seq = ln(seq + attn, params["n1g"][l], params["n1b"][l])
        ff = jax.nn.relu(ein("btd,de->bte", seq, params["w1"][l]) + params["b1"][l])
        ff = ein("btd,de->bte", ff, params["w2"][l]) + params["b2"][l]
        seq = ln(seq + ff, params["n2g"][l], params["n2b"][l])

    return seq[:, 0], seq[:, 1:]


# ----------------------------------------------------------------------------
# Deterministic parameter construction (synthetic init, matches module shapes)
# ----------------------------------------------------------------------------
def init_params(key, embed_dim, num_layers):
    D, L = embed_dim, num_layers
    keys = jax.random.split(key, 16)
    nrm = lambda k, shp, s=0.1: (s * jax.random.normal(k, shp)).astype(jnp.float32)
    params = {
        "cls":   jax.random.normal(keys[0], (1, D)).astype(jnp.float32),
        "pre_g": (1.0 + nrm(keys[1], (1, D))),
        "pre_b": nrm(keys[2], (1, D)),
        # per-layer stacked weights; Linear is applied as x @ W (+ b)
        "wq": nrm(keys[3], (L, D, D)), "bq": nrm(keys[4], (L, 1, D)),
        "wk": nrm(keys[5], (L, D, D)), "bk": nrm(keys[6], (L, 1, D)),
        "wv": nrm(keys[7], (L, D, D)), "bv": nrm(keys[8], (L, 1, D)),
        "wo": nrm(keys[9], (L, D, D)), "bo": nrm(keys[10], (L, 1, D)),
        "w1": nrm(keys[11], (L, D, D)), "b1": nrm(keys[12], (L, 1, D)),
        "w2": nrm(keys[13], (L, D, D)), "b2": nrm(keys[14], (L, 1, D)),
        "n1g": jnp.ones((L, 1, D), jnp.float32),
        "n1b": jnp.zeros((L, 1, D), jnp.float32),
        "n2g": jnp.ones((L, 1, D), jnp.float32),
        "n2b": jnp.zeros((L, 1, D), jnp.float32),
    }
    return params


if __name__ == "__main__":
    B, S, D = 2, 8, 32          # batch, sequence (pre-cls), embed_dim
    num_heads, num_layers = 2, 2

    key = jax.random.PRNGKey(0)
    k_x, k_p = jax.random.split(key)
    x = jax.random.normal(k_x, (B, S, D), dtype=jnp.float32)
    # batch 0: no padding; batch 1: last 3 tokens padded
    key_padding_mask = jnp.array(
        [[False] * S,
         [False] * (S - 3) + [True] * 3], dtype=bool)

    params = init_params(k_p, D, num_layers)

    cls_out, emb_out = vit1d_forward(
        x, key_padding_mask, params, num_heads=num_heads, attn_mask=None)
    jax.block_until_ready((cls_out, emb_out))

    # sanity check against pure-JAX f32 reference (kernel uses bf16 MXU inputs
    # with f32 accumulation -> slightly looser tolerance than pure f32).
    ref_cls, ref_emb = reference_forward(
        x, key_padding_mask, params, num_heads=num_heads, attn_mask=None)
    assert cls_out.shape == (B, D) and emb_out.shape == (B, S, D)
    np.testing.assert_allclose(np.asarray(cls_out), np.asarray(ref_cls),
                               rtol=5e-2, atol=5e-2)
    np.testing.assert_allclose(np.asarray(emb_out), np.asarray(ref_emb),
                               rtol=5e-2, atol=5e-2)

    print("KERNEL_OK")
</pallas_src>

<mosaic_0001>
module attributes {stable_mosaic.version = 11 : i64} {
  func.func @kernel(%arg0: i32, %arg1: i32, %arg2: memref<1x8x32xf32, #tpu.memory_space<vmem>>, %arg3: memref<1x32xf32, #tpu.memory_space<vmem>>, %arg4: memref<1x1x16xf32, #tpu.memory_space<vmem>>, %arg5: memref<1x32xf32, #tpu.memory_space<vmem>>, %arg6: memref<1x32xf32, #tpu.memory_space<vmem>>, %arg7: memref<1x32x96xbf16, #tpu.memory_space<vmem>>, %arg8: memref<1x3x32x32xbf16, #tpu.memory_space<vmem>>, %arg9: memref<1x10x32xf32, #tpu.memory_space<vmem>>, %arg10: memref<1x16x32xf32, #tpu.memory_space<vmem>>, %arg11: memref<1x16x32xf32, #tpu.memory_space<vmem>>) attributes {dimension_semantics = [#tpu.dimension_semantics<parallel>, #tpu.dimension_semantics<arbitrary>], iteration_bounds = array<i64: 2, 2>, scalar_prefetch = 0 : i64, scratch_operands = 1 : i64, tpu.core_type = #tpu.core_type<tc>, window_params = [{transform_indices = @transform_0, window_bounds = array<i64: 1, 8, 32>}, {pipeline_mode = #tpu.pipeline_mode<synchronous>, transform_indices = @transform_1, window_bounds = array<i64: 1, 32>}, {transform_indices = @transform_2, window_bounds = array<i64: 1, 1, 16>}, {pipeline_mode = #tpu.pipeline_mode<synchronous>, transform_indices = @transform_3, window_bounds = array<i64: 1, 32>}, {pipeline_mode = #tpu.pipeline_mode<synchronous>, transform_indices = @transform_4, window_bounds = array<i64: 1, 32>}, {transform_indices = @transform_5, window_bounds = array<i64: 1, 32, 96>}, {transform_indices = @transform_6, window_bounds = array<i64: 1, 3, 32, 32>}, {transform_indices = @transform_7, window_bounds = array<i64: 1, 10, 32>}, {transform_indices = @transform_8, window_bounds = array<i64: 1, 16, 32>}]} {
    %c0_i32 = arith.constant 0 : i32
    %0 = arith.cmpi eq, %arg1, %c0_i32 : i32
    %1 = arith.extui %0 : i1 to i32
    %c0_i32_0 = arith.constant 0 : i32
    %2 = arith.cmpi ne, %1, %c0_i32_0 : i32
    scf.if %2 {
      %c0_45 = arith.constant 0 : index
      %c0_46 = arith.constant 0 : index
      %c0_47 = arith.constant 0 : index
      %167 = vector.load %arg2[%c0_45, %c0_46, %c0_47] : memref<1x8x32xf32, #tpu.memory_space<vmem>>, vector<1x8x32xf32>
      %c0_48 = arith.constant 0 : index
      %c0_49 = arith.constant 0 : index
      %168 = vector.load %arg5[%c0_48, %c0_49] : memref<1x32xf32, #tpu.memory_space<vmem>>, vector<1x32xf32>
      %c0_50 = arith.constant 0 : index
      %c0_51 = arith.constant 0 : index
      %169 = vector.load %arg6[%c0_50, %c0_51] : memref<1x32xf32, #tpu.memory_space<vmem>>, vector<1x32xf32>
      %cst_52 = arith.constant dense<0.000000e+00> : vector<1x8xf32>
      %170 = vector.multi_reduction <add>, %167, %cst_52 [2] : vector<1x8x32xf32> to vector<1x8xf32>
      %171 = vector.shape_cast %170 : vector<1x8xf32> to vector<1x8x1xf32>
      %cst_53 = arith.constant 3.200000e+01 : f32
      %172 = vector.broadcast %cst_53 : f32 to vector<1x8x1xf32>
      %173 = arith.divf %171, %172 : vector<1x8x1xf32>
      %174 = vector.broadcast %173 : vector<1x8x1xf32> to vector<1x8x32xf32>
      %175 = arith.subf %167, %174 : vector<1x8x32xf32>
      %176 = arith.mulf %175, %175 : vector<1x8x32xf32>
      %cst_54 = arith.constant dense<0.000000e+00> : vector<1x8xf32>
      %177 = vector.multi_reduction <add>, %176, %cst_54 [2] : vector<1x8x32xf32> to vector<1x8xf32>
      %178 = vector.shape_cast %177 : vector<1x8xf32> to vector<1x8x1xf32>
      %cst_55 = arith.constant 3.200000e+01 : f32
      %179 = vector.broadcast %cst_55 : f32 to vector<1x8x1xf32>
      %180 = arith.divf %178, %179 : vector<1x8x1xf32>
      %181 = vector.broadcast %173 : vector<1x8x1xf32> to vector<1x8x32xf32>
      %182 = arith.subf %167, %181 : vector<1x8x32xf32>
      %cst_56 = arith.constant 9.99999974E-6 : f32
      %183 = vector.broadcast %cst_56 : f32 to vector<1x8x1xf32>
      %184 = arith.addf %180, %183 : vector<1x8x1xf32>
      %185 = math.rsqrt %184 : vector<1x8x1xf32>
      %186 = vector.broadcast %185 : vector<1x8x1xf32> to vector<1x8x32xf32>
      %187 = arith.mulf %182, %186 : vector<1x8x32xf32>
      %188 = vector.shape_cast %168 : vector<1x32xf32> to vector<1x1x32xf32>
      %189 = vector.broadcast %188 : vector<1x1x32xf32> to vector<1x8x32xf32>
      %190 = arith.mulf %187, %189 : vector<1x8x32xf32>
      %191 = vector.shape_cast %169 : vector<1x32xf32> to vector<1x1x32xf32>
      %192 = vector.broadcast %191 : vector<1x1x32xf32> to vector<1x8x32xf32>
      %193 = arith.addf %190, %192 : vector<1x8x32xf32>
      %c0_57 = arith.constant 0 : index
      %c0_58 = arith.constant 0 : index
      %194 = vector.load %arg3[%c0_57, %c0_58] : memref<1x32xf32, #tpu.memory_space<vmem>>, vector<1x32xf32>
      %195 = vector.shape_cast %194 : vector<1x32xf32> to vector<1x1x32xf32>
      %c0_59 = arith.constant 0 : index
      %c0_60 = arith.constant 0 : index
      %c0_61 = arith.constant 0 : index
      %196 = vector.load %arg11[%c0_59, %c0_60, %c0_61] : memref<1x16x32xf32, #tpu.memory_space<vmem>>, vector<1x1x32xf32>
      tpu.vector_store %arg11[%c0_59, %c0_60, %c0_61], %195 {strides = array<i32>} : memref<1x16x32xf32, #tpu.memory_space<vmem>>, vector<1x1x32xf32>,
      %c0_62 = arith.constant 0 : index
      %c1 = arith.constant 1 : index
      %c0_63 = arith.constant 0 : index
      %197 = vector.load %arg11[%c0_62, %c1, %c0_63] : memref<1x16x32xf32, #tpu.memory_space<vmem>>, vector<1x8x32xf32>
      tpu.vector_store %arg11[%c0_62, %c1, %c0_63], %193 {strides = array<i32>} : memref<1x16x32xf32, #tpu.memory_space<vmem>>, vector<1x8x32xf32>,
      %cst_64 = arith.constant 0.000000e+00 : f32
      %198 = vector.broadcast %cst_64 : f32 to vector<1x7x32xf32>
      %c0_65 = arith.constant 0 : index
      %c9 = arith.constant 9 : index
      %c0_66 = arith.constant 0 : index
      %199 = vector.load %arg11[%c0_65, %c9, %c0_66] : memref<1x16x32xf32, #tpu.memory_space<vmem>>, vector<1x7x32xf32>
      tpu.vector_store %arg11[%c0_65, %c9, %c0_66], %198 {strides = array<i32>} : memref<1x16x32xf32, #tpu.memory_space<vmem>>, vector<1x7x32xf32>,
    } else {
    }
    %c0 = arith.constant 0 : index
    %c0_1 = arith.constant 0 : index
    %c0_2 = arith.constant 0 : index
    %3 = vector.load %arg9[%c0, %c0_1, %c0_2] : memref<1x10x32xf32, #tpu.memory_space<vmem>>, vector<1x10x32xf32>
    %4 = vector.shape_cast %3 : vector<1x10x32xf32> to vector<10x32xf32>
    %c0_3 = arith.constant 0 : index
    %c0_4 = arith.constant 0 : index
    %c0_5 = arith.constant 0 : index
    %c0_6 = arith.constant 0 : index
    %5 = vector.load %arg8[%c0_3, %c0_4, %c0_5, %c0_6] : memref<1x3x32x32xbf16, #tpu.memory_space<vmem>>, vector<1x3x32x32xbf16>
    %6 = vector.shape_cast %5 : vector<1x3x32x32xbf16> to vector<3x32x32xbf16>
    %c0_7 = arith.constant 0 : index
    %c0_8 = arith.constant 0 : index
    %c0_9 = arith.constant 0 : index
    %7 = vector.load %arg11[%c0_7, %c0_8, %c0_9] : memref<1x16x32xf32, #tpu.memory_space<vmem>>, vector<1x16x32xf32>
    %8 = vector.shape_cast %7 : vector<1x16x32xf32> to vector<16x32xf32>
    %9 = arith.truncf %8 : vector<16x32xf32> to vector<16x32xbf16>
    %c0_10 = arith.constant 0 : index
    %c0_11 = arith.constant 0 : index
    %c0_12 = arith.constant 0 : index
    %10 = vector.load %arg7[%c0_10, %c0_11, %c0_12] : memref<1x32x96xbf16, #tpu.memory_space<vmem>>, vector<1x32x96xbf16>
    %11 = vector.shape_cast %10 : vector<1x32x96xbf16> to vector<32x96xbf16>
    %cst = arith.constant dense<0.000000e+00> : vector<16x96xf32>
    %12 = tpu.matmul %9, %11, %cst {dimension_numbers = #tpu.dot_dimension_numbers<[1], [0], [0], [1], [0, 0, 1, 1], [], []>} : vector<16x32xbf16>, vector<32x96xbf16>, vector<16x96xf32> -> vector<16x96xf32>
    %13 = vector.extract_strided_slice %12 {offsets = [0, 0], sizes = [16, 32], strides = [1, 1]} : vector<16x96xf32> to vector<16x32xf32>
    %14 = vector.extract_strided_slice %4 {offsets = [0, 0], sizes = [1, 32], strides = [1, 1]} : vector<10x32xf32> to vector<1x32xf32>
    %15 = vector.broadcast %14 : vector<1x32xf32> to vector<16x32xf32>
    %16 = arith.addf %13, %15 : vector<16x32xf32>
    %17 = vector.extract_strided_slice %12 {offsets = [0, 32], sizes = [16, 32], strides = [1, 1]} : vector<16x96xf32> to vector<16x32xf32>
    %18 = vector.extract_strided_slice %4 {offsets = [1, 0], sizes = [1, 32], strides = [1, 1]} : vector<10x32xf32> to vector<1x32xf32>
    %19 = vector.broadcast %18 : vector<1x32xf32> to vector<16x32xf32>
    %20 = arith.addf %17, %19 : vector<16x32xf32>
    %21 = vector.extract_strided_slice %12 {offsets = [0, 64], sizes = [16, 32], strides = [1, 1]} : vector<16x96xf32> to vector<16x32xf32>
    %22 = vector.extract_strided_slice %4 {offsets = [2, 0], sizes = [1, 32], strides = [1, 1]} : vector<10x32xf32> to vector<1x32xf32>
    %23 = vector.broadcast %22 : vector<1x32xf32> to vector<16x32xf32>
    %24 = arith.addf %21, %23 : vector<16x32xf32>
    %c0_13 = arith.constant 0 : index
    %c0_14 = arith.constant 0 : index
    %c0_15 = arith.constant 0 : index
    %25 = vector.load %arg4[%c0_13, %c0_14, %c0_15] : memref<1x1x16xf32, #tpu.memory_space<vmem>>, vector<1x1x16xf32>
    %26 = vector.extract_strided_slice %6 {offsets = [0, 0, 0], sizes = [1, 32, 32], strides = [1, 1, 1]} : vector<3x32x32xbf16> to vector<1x32x32xbf16>
    %27 = vector.shape_cast %26 : vector<1x32x32xbf16> to vector<32x32xbf16>
    %cst_16 = arith.constant 0.000000e+00 : f32
    %28 = vector.broadcast %cst_16 : f32 to vector<16x32xf32>
    %29 = vector.extract_strided_slice %16 {offsets = [0, 0], sizes = [16, 16], strides = [1, 1]} : vector<16x32xf32> to vector<16x16xf32>
    %30 = vector.shape_cast %29 : vector<16x16xf32> to vector<1x16x16xf32>
    %31 = arith.truncf %30 : vector<1x16x16xf32> to vector<1x16x16xbf16>
    %32 = vector.extract_strided_slice %20 {offsets = [0, 0], sizes = [16, 16], strides = [1, 1]} : vector<16x32xf32> to vector<16x16xf32>
    %33 = vector.shape_cast %32 : vector<16x16xf32> to vector<1x16x16xf32>
    %34 = arith.truncf %33 : vector<1x16x16xf32> to vector<1x16x16xbf16>
    %35 = vector.extract_strided_slice %24 {offsets = [0, 0], sizes = [16, 16], strides = [1, 1]} : vector<16x32xf32> to vector<16x16xf32>
    %36 = vector.shape_cast %35 : vector<16x16xf32> to vector<1x16x16xf32>
    %37 = arith.truncf %36 : vector<1x16x16xf32> to vector<1x16x16xbf16>
    "tpu.trace_start"() <{level = 10 : i32, message = "bqd,bkd->bqk"}> : () -> ()
    %cst_17 = arith.constant dense<0.000000e+00> : vector<1x16x16xf32>
    %38 = tpu.matmul %31, %34, %cst_17 {dimension_numbers = #tpu.dot_dimension_numbers<[2], [2], [1], [1], [0, 0, 0, 1, 1, 1], [0], [0]>} : vector<1x16x16xbf16>, vector<1x16x16xbf16>, vector<1x16x16xf32> -> vector<1x16x16xf32>
    "tpu.trace_stop"() : () -> ()
    %cst_18 = arith.constant 2.500000e-01 : f32
    %39 = vector.broadcast %cst_18 : f32 to vector<1x16x16xf32>
    %40 = arith.mulf %38, %39 : vector<1x16x16xf32>
    %41 = vector.broadcast %25 : vector<1x1x16xf32> to vector<1x16x16xf32>
    %42 = arith.addf %40, %41 : vector<1x16x16xf32>
    %cst_19 = arith.constant dense<0xFF800000> : vector<1x16xf32>
    %43 = vector.multi_reduction <maximumf>, %42, %cst_19 [2] : vector<1x16x16xf32> to vector<1x16xf32>
    %44 = vector.shape_cast %43 : vector<1x16xf32> to vector<1x16x1xf32>
    %45 = vector.broadcast %44 : vector<1x16x1xf32> to vector<1x16x16xf32>
    %46 = arith.subf %42, %45 : vector<1x16x16xf32>
    %47 = math.exp %46 : vector<1x16x16xf32>
    %cst_20 = arith.constant dense<0.000000e+00> : vector<1x16xf32>
    %48 = vector.multi_reduction <add>, %47, %cst_20 [2] : vector<1x16x16xf32> to vector<1x16xf32>
    %49 = vector.shape_cast %48 : vector<1x16xf32> to vector<1x16x1xf32>
    %50 = tpu.reciprocal %49 {approx = true} : vector<1x16x1xf32> -> vector<1x16x1xf32>
    %51 = vector.broadcast %50 : vector<1x16x1xf32> to vector<1x16x16xf32>
    %52 = arith.mulf %47, %51 : vector<1x16x16xf32>
    %53 = arith.truncf %52 : vector<1x16x16xf32> to vector<1x16x16xbf16>
    "tpu.trace_start"() <{level = 10 : i32, message = "bqk,bkd->bqd"}> : () -> ()
    %cst_21 = arith.constant dense<0.000000e+00> : vector<1x16x16xf32>
    %54 = tpu.matmul %53, %37, %cst_21 {dimension_numbers = #tpu.dot_dimension_numbers<[2], [1], [1], [2], [0, 0, 0, 1, 1, 2], [0], [0]>} : vector<1x16x16xbf16>, vector<1x16x16xbf16>, vector<1x16x16xf32> -> vector<1x16x16xf32>
    "tpu.trace_stop"() : () -> ()
    %55 = vector.shape_cast %54 : vector<1x16x16xf32> to vector<16x16xf32>
    %56 = arith.truncf %55 : vector<16x16xf32> to vector<16x16xbf16>
    %57 = vector.extract_strided_slice %27 {offsets = [0, 0], sizes = [16, 32], strides = [1, 1]} : vector<32x32xbf16> to vector<16x32xbf16>
    %cst_22 = arith.constant dense<0.000000e+00> : vector<16x32xf32>
    %58 = tpu.matmul %56, %57, %cst_22 {dimension_numbers = #tpu.dot_dimension_numbers<[1], [0], [0], [1], [0, 0, 1, 1], [], []>} : vector<16x16xbf16>, vector<16x32xbf16>, vector<16x32xf32> -> vector<16x32xf32>
    %59 = arith.addf %28, %58 : vector<16x32xf32>
    %60 = vector.extract_strided_slice %16 {offsets = [0, 16], sizes = [16, 16], strides = [1, 1]} : vector<16x32xf32> to vector<16x16xf32>
    %61 = vector.shape_cast %60 : vector<16x16xf32> to vector<1x16x16xf32>
    %62 = arith.truncf %61 : vector<1x16x16xf32> to vector<1x16x16xbf16>
    %63 = vector.extract_strided_slice %20 {offsets = [0, 16], sizes = [16, 16], strides = [1, 1]} : vector<16x32xf32> to vector<16x16xf32>
    %64 = vector.shape_cast %63 : vector<16x16xf32> to vector<1x16x16xf32>
    %65 = arith.truncf %64 : vector<1x16x16xf32> to vector<1x16x16xbf16>
    %66 = vector.extract_strided_slice %24 {offsets = [0, 16], sizes = [16, 16], strides = [1, 1]} : vector<16x32xf32> to vector<16x16xf32>
    %67 = vector.shape_cast %66 : vector<16x16xf32> to vector<1x16x16xf32>
    %68 = arith.truncf %67 : vector<1x16x16xf32> to vector<1x16x16xbf16>
    "tpu.trace_start"() <{level = 10 : i32, message = "bqd,bkd->bqk"}> : () -> ()
    %cst_23 = arith.constant dense<0.000000e+00> : vector<1x16x16xf32>
    %69 = tpu.matmul %62, %65, %cst_23 {dimension_numbers = #tpu.dot_dimension_numbers<[2], [2], [1], [1], [0, 0, 0, 1, 1, 1], [0], [0]>} : vector<1x16x16xbf16>, vector<1x16x16xbf16>, vector<1x16x16xf32> -> vector<1x16x16xf32>
    "tpu.trace_stop"() : () -> ()
    %cst_24 = arith.constant 2.500000e-01 : f32
    %70 = vector.broadcast %cst_24 : f32 to vector<1x16x16xf32>
    %71 = arith.mulf %69, %70 : vector<1x16x16xf32>
    %72 = vector.broadcast %25 : vector<1x1x16xf32> to vector<1x16x16xf32>
    %73 = arith.addf %71, %72 : vector<1x16x16xf32>
    %cst_25 = arith.constant dense<0xFF800000> : vector<1x16xf32>
    %74 = vector.multi_reduction <maximumf>, %73, %cst_25 [2] : vector<1x16x16xf32> to vector<1x16xf32>
    %75 = vector.shape_cast %74 : vector<1x16xf32> to vector<1x16x1xf32>
    %76 = vector.broadcast %75 : vector<1x16x1xf32> to vector<1x16x16xf32>
    %77 = arith.subf %73, %76 : vector<1x16x16xf32>
    %78 = math.exp %77 : vector<1x16x16xf32>
    %cst_26 = arith.constant dense<0.000000e+00> : vector<1x16xf32>
    %79 = vector.multi_reduction <add>, %78, %cst_26 [2] : vector<1x16x16xf32> to vector<1x16xf32>
    %80 = vector.shape_cast %79 : vector<1x16xf32> to vector<1x16x1xf32>
    %81 = tpu.reciprocal %80 {approx = true} : vector<1x16x1xf32> -> vector<1x16x1xf32>
    %82 = vector.broadcast %81 : vector<1x16x1xf32> to vector<1x16x16xf32>
    %83 = arith.mulf %78, %82 : vector<1x16x16xf32>
    %84 = arith.truncf %83 : vector<1x16x16xf32> to vector<1x16x16xbf16>
    "tpu.trace_start"() <{level = 10 : i32, message = "bqk,bkd->bqd"}> : () -> ()
    %cst_27 = arith.constant dense<0.000000e+00> : vector<1x16x16xf32>
    %85 = tpu.matmul %84, %68, %cst_27 {dimension_numbers = #tpu.dot_dimension_numbers<[2], [1], [1], [2], [0, 0, 0, 1, 1, 2], [0], [0]>} : vector<1x16x16xbf16>, vector<1x16x16xbf16>, vector<1x16x16xf32> -> vector<1x16x16xf32>
    "tpu.trace_stop"() : () -> ()
    %86 = vector.shape_cast %85 : vector<1x16x16xf32> to vector<16x16xf32>
    %87 = arith.truncf %86 : vector<16x16xf32> to vector<16x16xbf16>
    %88 = vector.extract_strided_slice %27 {offsets = [16, 0], sizes = [16, 32], strides = [1, 1]} : vector<32x32xbf16> to vector<16x32xbf16>
    %cst_28 = arith.constant dense<0.000000e+00> : vector<16x32xf32>
    %89 = tpu.matmul %87, %88, %cst_28 {dimension_numbers = #tpu.dot_dimension_numbers<[1], [0], [0], [1], [0, 0, 1, 1], [], []>} : vector<16x16xbf16>, vector<16x32xbf16>, vector<16x32xf32> -> vector<16x32xf32>
    %90 = arith.addf %59, %89 : vector<16x32xf32>
    %91 = vector.extract_strided_slice %4 {offsets = [3, 0], sizes = [1, 32], strides = [1, 1]} : vector<10x32xf32> to vector<1x32xf32>
    %92 = vector.broadcast %91 : vector<1x32xf32> to vector<16x32xf32>
    %93 = arith.addf %90, %92 : vector<16x32xf32>
    %94 = arith.addf %8, %93 : vector<16x32xf32>
    %95 = vector.extract_strided_slice %4 {offsets = [6, 0], sizes = [1, 32], strides = [1, 1]} : vector<10x32xf32> to vector<1x32xf32>
    %96 = vector.extract_strided_slice %4 {offsets = [7, 0], sizes = [1, 32], strides = [1, 1]} : vector<10x32xf32> to vector<1x32xf32>
    %cst_29 = arith.constant dense<0.000000e+00> : vector<16xf32>
    %97 = vector.multi_reduction <add>, %94, %cst_29 [1] : vector<16x32xf32> to vector<16xf32>
    %98 = vector.shape_cast %97 : vector<16xf32> to vector<16x1xf32>
    %cst_30 = arith.constant 3.200000e+01 : f32
    %99 = vector.broadcast %cst_30 : f32 to vector<16x1xf32>
    %100 = arith.divf %98, %99 : vector<16x1xf32>
    %101 = vector.broadcast %100 : vector<16x1xf32> to vector<16x32xf32>
    %102 = arith.subf %94, %101 : vector<16x32xf32>
    %103 = arith.mulf %102, %102 : vector<16x32xf32>
    %cst_31 = arith.constant dense<0.000000e+00> : vector<16xf32>
    %104 = vector.multi_reduction <add>, %103, %cst_31 [1] : vector<16x32xf32> to vector<16xf32>
    %105 = vector.shape_cast %104 : vector<16xf32> to vector<16x1xf32>
    %cst_32 = arith.constant 3.200000e+01 : f32
    %106 = vector.broadcast %cst_32 : f32 to vector<16x1xf32>
    %107 = arith.divf %105, %106 : vector<16x1xf32>
    %108 = vector.broadcast %100 : vector<16x1xf32> to vector<16x32xf32>
    %109 = arith.subf %94, %108 : vector<16x32xf32>
    %cst_33 = arith.constant 9.99999974E-6 : f32
    %110 = vector.broadcast %cst_33 : f32 to vector<16x1xf32>
    %111 = arith.addf %107, %110 : vector<16x1xf32>
    %112 = math.rsqrt %111 : vector<16x1xf32>
    %113 = vector.broadcast %112 : vector<16x1xf32> to vector<16x32xf32>
    %114 = arith.mulf %109, %113 : vector<16x32xf32>
    %115 = vector.broadcast %95 : vector<1x32xf32> to vector<16x32xf32>
    %116 = arith.mulf %114, %115 : vector<16x32xf32>
    %117 = vector.broadcast %96 : vector<1x32xf32> to vector<16x32xf32>
    %118 = arith.addf %116, %117 : vector<16x32xf32>
    %119 = arith.truncf %118 : vector<16x32xf32> to vector<16x32xbf16>
    %120 = vector.extract_strided_slice %6 {offsets = [1, 0, 0], sizes = [1, 32, 32], strides = [1, 1, 1]} : vector<3x32x32xbf16> to vector<1x32x32xbf16>
    %121 = vector.shape_cast %120 : vector<1x32x32xbf16> to vector<32x32xbf16>
    %cst_34 = arith.constant dense<0.000000e+00> : vector<16x32xf32>
    %122 = tpu.matmul %119, %121, %cst_34 {dimension_numbers = #tpu.dot_dimension_numbers<[1], [0], [0], [1], [0, 0, 1, 1], [], []>} : vector<16x32xbf16>, vector<32x32xbf16>, vector<16x32xf32> -> vector<16x32xf32>
    %123 = vector.extract_strided_slice %4 {offsets = [4, 0], sizes = [1, 32], strides = [1, 1]} : vector<10x32xf32> to vector<1x32xf32>
    %124 = vector.broadcast %123 : vector<1x32xf32> to vector<16x32xf32>
    %125 = arith.addf %122, %124 : vector<16x32xf32>
    %cst_35 = arith.constant 0.000000e+00 : f32
    %126 = vector.broadcast %cst_35 : f32 to vector<16x32xf32>
    %127 = arith.maximumf %125, %126 : vector<16x32xf32>
    %128 = arith.truncf %127 : vector<16x32xf32> to vector<16x32xbf16>
    %129 = vector.extract_strided_slice %6 {offsets = [2, 0, 0], sizes = [1, 32, 32], strides = [1, 1, 1]} : vector<3x32x32xbf16> to vector<1x32x32xbf16>
    %130 = vector.shape_cast %129 : vector<1x32x32xbf16> to vector<32x32xbf16>
    %cst_36 = arith.constant dense<0.000000e+00> : vector<16x32xf32>
    %131 = tpu.matmul %128, %130, %cst_36 {dimension_numbers = #tpu.dot_dimension_numbers<[1], [0], [0], [1], [0, 0, 1, 1], [], []>} : vector<16x32xbf16>, vector<32x32xbf16>, vector<16x32xf32> -> vector<16x32xf32>
    %132 = vector.extract_strided_slice %4 {offsets = [5, 0], sizes = [1, 32], strides = [1, 1]} : vector<10x32xf32> to vector<1x32xf32>
    %133 = vector.broadcast %132 : vector<1x32xf32> to vector<16x32xf32>
    %134 = arith.addf %131, %133 : vector<16x32xf32>
    %135 = arith.addf %118, %134 : vector<16x32xf32>
    %136 = vector.extract_strided_slice %4 {offsets = [8, 0], sizes = [1, 32], strides = [1, 1]} : vector<10x32xf32> to vector<1x32xf32>
    %137 = vector.extract_strided_slice %4 {offsets = [9, 0], sizes = [1, 32], strides = [1, 1]} : vector<10x32xf32> to vector<1x32xf32>
    %cst_37 = arith.constant dense<0.000000e+00> : vector<16xf32>
    %138 = vector.multi_reduction <add>, %135, %cst_37 [1] : vector<16x32xf32> to vector<16xf32>
    %139 = vector.shape_cast %138 : vector<16xf32> to vector<16x1xf32>
    %cst_38 = arith.constant 3.200000e+01 : f32
    %140 = vector.broadcast %cst_38 : f32 to vector<16x1xf32>
    %141 = arith.divf %139, %140 : vector<16x1xf32>
    %142 = vector.broadcast %141 : vector<16x1xf32> to vector<16x32xf32>
    %143 = arith.subf %135, %142 : vector<16x32xf32>
    %144 = arith.mulf %143, %143 : vector<16x32xf32>
    %cst_39 = arith.constant dense<0.000000e+00> : vector<16xf32>
    %145 = vector.multi_reduction <add>, %144, %cst_39 [1] : vector<16x32xf32> to vector<16xf32>
    %146 = vector.shape_cast %145 : vector<16xf32> to vector<16x1xf32>
    %cst_40 = arith.constant 3.200000e+01 : f32
    %147 = vector.broadcast %cst_40 : f32 to vector<16x1xf32>
    %148 = arith.divf %146, %147 : vector<16x1xf32>
    %149 = vector.broadcast %141 : vector<16x1xf32> to vector<16x32xf32>
    %150 = arith.subf %135, %149 : vector<16x32xf32>
    %cst_41 = arith.constant 9.99999974E-6 : f32
    %151 = vector.broadcast %cst_41 : f32 to vector<16x1xf32>
    %152 = arith.addf %148, %151 : vector<16x1xf32>
    %153 = math.rsqrt %152 : vector<16x1xf32>
    %154 = vector.broadcast %153 : vector<16x1xf32> to vector<16x32xf32>
    %155 = arith.mulf %150, %154 : vector<16x32xf32>
    %156 = vector.broadcast %136 : vector<1x32xf32> to vector<16x32xf32>
    %157 = arith.mulf %155, %156 : vector<16x32xf32>
    %158 = vector.broadcast %137 : vector<1x32xf32> to vector<16x32xf32>
    %159 = arith.addf %157, %158 : vector<16x32xf32>
    %160 = vector.shape_cast %159 : vector<16x32xf32> to vector<1x16x32xf32>
    %c1_i32 = arith.constant 1 : i32
    %161 = arith.cmpi slt, %arg1, %c1_i32 : i32
    %162 = arith.extui %161 : i1 to i32
    %c0_i32_42 = arith.constant 0 : i32
    %163 = arith.cmpi ne, %162, %c0_i32_42 : i32
    scf.if %163 {
      %c0_45 = arith.constant 0 : index
      %c0_46 = arith.constant 0 : index
      %c0_47 = arith.constant 0 : index
      %167 = vector.load %arg11[%c0_45, %c0_46, %c0_47] : memref<1x16x32xf32, #tpu.memory_space<vmem>>, vector<1x16x32xf32>
      tpu.vector_store %arg11[%c0_45, %c0_46, %c0_47], %160 {strides = array<i32>} : memref<1x16x32xf32, #tpu.memory_space<vmem>>, vector<1x16x32xf32>,
    } else {
    }
    %c1_i32_43 = arith.constant 1 : i32
    %164 = arith.cmpi eq, %arg1, %c1_i32_43 : i32
    %165 = arith.extui %164 : i1 to i32
    %c0_i32_44 = arith.constant 0 : i32
    %166 = arith.cmpi ne, %165, %c0_i32_44 : i32
    scf.if %166 {
      %c0_45 = arith.constant 0 : index
      %c0_46 = arith.constant 0 : index
      %c0_47 = arith.constant 0 : index
      %167 = vector.load %arg10[%c0_45, %c0_46, %c0_47] : memref<1x16x32xf32, #tpu.memory_space<vmem>>, vector<1x16x32xf32>
      tpu.vector_store %arg10[%c0_45, %c0_46, %c0_47], %160 {strides = array<i32>} : memref<1x16x32xf32, #tpu.memory_space<vmem>>, vector<1x16x32xf32>,
    } else {
    }
    return
  }
  func.func @transform_0(%arg0: i32, %arg1: i32) -> (i32, i32, i32) {
    %c0_i32 = arith.constant 0 : i32
    %c0_i32_0 = arith.constant 0 : i32
    %c0_i32_1 = arith.constant 0 : i32
    return %arg0, %c0_i32, %c0_i32_0 : i32, i32, i32
  }
  func.func @transform_1(%arg0: i32, %arg1: i32) -> (i32, i32) {
    %c0_i32 = arith.constant 0 : i32
    %c0_i32_0 = arith.constant 0 : i32
    %c0_i32_1 = arith.constant 0 : i32
    return %c0_i32, %c0_i32_0 : i32, i32
  }
  func.func @transform_2(%arg0: i32, %arg1: i32) -> (i32, i32, i32) {
    %c0_i32 = arith.constant 0 : i32
    %c0_i32_0 = arith.constant 0 : i32
    %c0_i32_1 = arith.constant 0 : i32
    return %arg0, %c0_i32, %c0_i32_0 : i32, i32, i32
  }
  func.func @transform_3(%arg0: i32, %arg1: i32) -> (i32, i32) {
    %c0_i32 = arith.constant 0 : i32
    %c0_i32_0 = arith.constant 0 : i32
    %c0_i32_1 = arith.constant 0 : i32
    return %c0_i32, %c0_i32_0 : i32, i32
  }
  func.func @transform_4(%arg0: i32, %arg1: i32) -> (i32, i32) {
    %c0_i32 = arith.constant 0 : i32
    %c0_i32_0 = arith.constant 0 : i32
    %c0_i32_1 = arith.constant 0 : i32
    return %c0_i32, %c0_i32_0 : i32, i32
  }
  func.func @transform_5(%arg0: i32, %arg1: i32) -> (i32, i32, i32) {
    %c0_i32 = arith.constant 0 : i32
    %c0_i32_0 = arith.constant 0 : i32
    %c0_i32_1 = arith.constant 0 : i32
    return %arg1, %c0_i32, %c0_i32_0 : i32, i32, i32
  }
  func.func @transform_6(%arg0: i32, %arg1: i32) -> (i32, i32, i32, i32) {
    %c0_i32 = arith.constant 0 : i32
    %c0_i32_0 = arith.constant 0 : i32
    %c0_i32_1 = arith.constant 0 : i32
    %c0_i32_2 = arith.constant 0 : i32
    return %arg1, %c0_i32, %c0_i32_0, %c0_i32_1 : i32, i32, i32, i32
  }
  func.func @transform_7(%arg0: i32, %arg1: i32) -> (i32, i32, i32) {
    %c0_i32 = arith.constant 0 : i32
    %c0_i32_0 = arith.constant 0 : i32
    %c0_i32_1 = arith.constant 0 : i32
    return %arg1, %c0_i32, %c0_i32_0 : i32, i32, i32
  }
  func.func @transform_8(%arg0: i32, %arg1: i32) -> (i32, i32, i32) {
    %c0_i32 = arith.constant 0 : i32
    %c0_i32_0 = arith.constant 0 : i32
    %c0_i32_1 = arith.constant 0 : i32
    return %arg0, %c0_i32, %c0_i32_0 : i32, i32, i32
  }
}

</mosaic_0001>

<llo_original>
// kernel: tpu_custom_call.1
$region0: #{tpu_custom_call.1}
  #allocation0 [shape = 'u32[]', space=smem, size = 0x4, offset = 0x4, fixed_abs, tag = 'smem constant byte address 0x4 - core index']
  #allocation1 [shape = 'u32[144,128]{1,0:T(1,128)}', space=vmem, size = 0x12000, scoped, tag = 'internal scratch']
  #allocation2 [shape = 'f32[1,16,32]{2,1,0:T(8,128)}', space=vmem, size = 0x2000, scoped, tag = 'scratch operand']
  %s0 = inlined_call_operand.vmem [shape: f32[2,8,32], index: 0, kind: input, shape index: {}]
  %s1 = inlined_call_operand.vmem [shape: f32[1,32], index: 1, kind: input, shape index: {}]
  %s2 = inlined_call_operand.vmem [shape: f32[2,1,16], index: 2, kind: input, shape index: {}]
  %s3 = inlined_call_operand.vmem [shape: f32[1,32], index: 3, kind: input, shape index: {}]
  %s4 = inlined_call_operand.vmem [shape: f32[1,32], index: 4, kind: input, shape index: {}]
  %s5 = inlined_call_operand.vmem [shape: bf16[2,32,96], index: 5, kind: input, shape index: {}]
  %s6 = inlined_call_operand.hbm [shape: bf16[2,3,32,32], index: 6, kind: input, shape index: {}]
  %s7 = inlined_call_operand.vmem [shape: f32[2,10,32], index: 7, kind: input, shape index: {}]
  %s8 = inlined_call_operand.hbm [shape: f32[2,16,32], index: 8, kind: output, shape index: {}]
  %s9 = sld [smem:[#allocation0]]
  $region81: #{tpu_custom_call.1} parent=0
    _
  %s11 = ssub.s32 1, %s9
  %s12 = scalar_select 0, %s11, %s9
  $region1: #{tpu_custom_call.1} parent=0
    #allocation3 [shape = 'u8[49152]{0}', space=vmem, size = 0xc000, scoped, tag = 'input window, operand 6']
    #allocation4 [shape = 's32[2]{0}', space=sflag, size = 0x8, scoped, tag = 'scoped memory for tpu_custom_call.1']
    #allocation5 [shape = 's32[2]{0}', space=sflag, size = 0x8, scoped, tag = 'scoped memory for tpu_custom_call.1']
    #allocation6 [shape = 'u8[16384]{0}', space=vmem, size = 0x4000, scoped, tag = 'output window, operand 0']
    %13 = vsyncpa [#allocation4], 0
    %s14 = scalar_lea.sflag [#allocation4], 1
    %15 = vsyncpa %s14, 0
    %16 = vsyncpa [#allocation5], 0
    %s17 = scalar_lea.sflag [#allocation5], 1
    %18 = vsyncpa %s17, 0
    loop: start=0, step=1, limit=6
    $region2: #{tpu_custom_call.1} parent=1 // loop_pre_header
      _
    $region3: #{tpu_custom_call.1} parent=1 // loop_header
      %s20 = sphi 0, %s24
      %p21 = scmp.ge.s32.totalorder %s20, 6
      %s27 = sphi 0, %s39
      %s28 = sphi 0, %s35
      %s29 = sphi 0, %s27
      %s30 = sphi 0, %s28
      %s31 = sphi 0, %s29
      %s32 = sphi 0, %s30
      %s42 = sphi 0, %s44
      %s45 = sphi 0, %s42
      %s46 = sphi 0, %s45
      %s62 = sphi 0, %s46
      %s66 = sphi 0, %s66
      %s68 = sphi 0, %s66
      %s69 = sphi 0, %s68
      %s83 = sphi 0, %s69
      %s89 = sphi 0, %s91
      %s92 = sphi 0, %s89
      %s93 = sphi 0, %s92
      %s109 = sphi 0, %s93
      %s113 = sphi 0, %s113
      %s115 = sphi 0, %s113
      %s116 = sphi 0, %s115
      %s130 = sphi 0, %s116
      %s134 = sphi 0, %s134
      %s136 = sphi 0, %s134
      %s137 = sphi 0, %s136
      %s151 = sphi 0, %s137
      %s157 = sphi 0, %s159
      %s160 = sphi 0, %s157
      %s161 = sphi 0, %s160
      %s177 = sphi 0, %s161
      %s183 = sphi 0, %s185
      %s186 = sphi 0, %s183
      %s187 = sphi 0, %s186
      %s203 = sphi 0, %s187
      %s209 = sphi 0, %s211
      %s212 = sphi 0, %s209
      %s213 = sphi 0, %s212
      %s229 = sphi 0, %s213
      %s235 = sphi 0, %s237
      %s238 = sphi 0, %s235
      %s239 = sphi 0, %s238
      %s255 = sphi 0, %s239
    $region4: #{tpu_custom_call.1} parent=1 // loop_header_branch
      %23 = sbr.rel (%p21) target = $region8
    $region5: #{tpu_custom_call.1} parent=1 // loop_body
      %s25 = ssub.s32 %s20, 1
      %s26 = ssub.s32 %s20, 2
      %s33 = sadd.s32 1, %s28
      %p34 = scmp.ge.s32.totalorder %s33, 2
      %s35 = scalar_select %p34, 0, %s33
      %s36 = sadd.s32 1, %s27
      %s37 = scalar_select %p34, %s36, %s27
      %p38 = scmp.ge.s32.totalorder %s37, 2
      %s39 = scalar_select %p38, 0, %s37
      %s40 = ssub.s32 %s27, %s39
      %p41 = scmp.eq.s32.totalorder %s40, 0
      %s43 = sadd.s32 %s42, 1
      %s44 = scalar_select %p41, %s42, %s43
      %p47 = pneg %p41
      %p48 = scmp.eq.s32.totalorder %s20, 3
      %p49 = por %p47, %p48
      %p50 = scmp.ne.s32.totalorder %s42, %s45
      %p51 = scmp.eq.s32.totalorder %s20, 0
      %p52 = por %p50, %p51
      %p53 = scmp.ne.s32.totalorder %s42, %s45
      %p54 = scmp.eq.s32.totalorder %s25, 3
      %p55 = por %p53, %p54
      %p56 = scmp.ne.s32.totalorder %s45, %s46
      %p57 = scmp.eq.s32.totalorder %s25, 0
      %p58 = por %p56, %p57
      %p59 = scmp.ne.s32.totalorder %s45, %s46
      %p60 = scmp.eq.s32.totalorder %s26, 3
      %p61 = por %p59, %p60
      %p63 = scmp.ne.s32.totalorder %s46, %s62
      %p64 = scmp.eq.s32.totalorder %s26, 0
      %p65 = por %p63, %p64
      %s67 = sadd.s32 %s66, 1
      %p70 = scmp.eq.s32.totalorder %s20, 3
      %p71 = scmp.ne.s32.totalorder %s66, %s68
      %p72 = scmp.eq.s32.totalorder %s20, 0
      %p73 = por %p71, %p72
      %p74 = scmp.ne.s32.totalorder %s66, %s68
      %p75 = scmp.eq.s32.totalorder %s25, 3
      %p76 = por %p74, %p75
      %p77 = scmp.ne.s32.totalorder %s68, %s69
      %p78 = scmp.eq.s32.totalorder %s25, 0
      %p79 = por %p77, %p78
      %p80 = scmp.ne.s32.totalorder %s68, %s69
      %p81 = scmp.eq.s32.totalorder %s26, 3
      %p82 = por %p80, %p81
      %p84 = scmp.ne.s32.totalorder %s69, %s83
      %p85 = scmp.eq.s32.totalorder %s26, 0
      %p86 = por %p84, %p85
      %s87 = ssub.s32 %s27, %s39
      %p88 = scmp.eq.s32.totalorder %s87, 0
      %s90 = sadd.s32 %s89, 1
      %s91 = scalar_select %p88, %s89, %s90
      %p94 = pneg %p88
      %p95 = scmp.eq.s32.totalorder %s20, 3
      %p96 = por %p94, %p95
      %p97 = scmp.ne.s32.totalorder %s89, %s92
      %p98 = scmp.eq.s32.totalorder %s20, 0
      %p99 = por %p97, %p98
      %p100 = scmp.ne.s32.totalorder %s89, %s92
      %p101 = scmp.eq.s32.totalorder %s25, 3
      %p102 = por %p100, %p101
      %p103 = scmp.ne.s32.totalorder %s92, %s93
      %p104 = scmp.eq.s32.totalorder %s25, 0
      %p105 = por %p103, %p104
      %p106 = scmp.ne.s32.totalorder %s92, %s93
      %p107 = scmp.eq.s32.totalorder %s26, 3
      %p108 = por %p106, %p107
      %p110 = scmp.ne.s32.totalorder %s93, %s109
      %p111 = scmp.eq.s32.totalorder %s26, 0
      %p112 = por %p110, %p111
      %s114 = sadd.s32 %s113, 1
      %p117 = scmp.eq.s32.totalorder %s20, 3
      %p118 = scmp.ne.s32.totalorder %s113, %s115
      %p119 = scmp.eq.s32.totalorder %s20, 0
      %p120 = por %p118, %p119
      %p121 = scmp.ne.s32.totalorder %s113, %s115
      %p122 = scmp.eq.s32.totalorder %s25, 3
      %p123 = por %p121, %p122
      %p124 = scmp.ne.s32.totalorder %s115, %s116
      %p125 = scmp.eq.s32.totalorder %s25, 0
      %p126 = por %p124, %p125
      %p127 = scmp.ne.s32.totalorder %s115, %s116
      %p128 = scmp.eq.s32.totalorder %s26, 3
      %p129 = por %p127, %p128
      %p131 = scmp.ne.s32.totalorder %s116, %s130
      %p132 = scmp.eq.s32.totalorder %s26, 0
      %p133 = por %p131, %p132
      %s135 = sadd.s32 %s134, 1
      %p138 = scmp.eq.s32.totalorder %s20, 3
      %p139 = scmp.ne.s32.totalorder %s134, %s136
      %p140 = scmp.eq.s32.totalorder %s20, 0
      %p141 = por %p139, %p140
      %p142 = scmp.ne.s32.totalorder %s134, %s136
      %p143 = scmp.eq.s32.totalorder %s25, 3
      %p144 = por %p142, %p143
      %p145 = scmp.ne.s32.totalorder %s136, %s137
      %p146 = scmp.eq.s32.totalorder %s25, 0
      %p147 = por %p145, %p146
      %p148 = scmp.ne.s32.totalorder %s136, %s137
      %p149 = scmp.eq.s32.totalorder %s26, 3
      %p150 = por %p148, %p149
      %p152 = scmp.ne.s32.totalorder %s137, %s151
      %p153 = scmp.eq.s32.totalorder %s26, 0
      %p154 = por %p152, %p153
      %s155 = ssub.s32 %s28, %s35
      %p156 = scmp.eq.s32.totalorder %s155, 0
      %s158 = sadd.s32 %s157, 1
      %s159 = scalar_select %p156, %s157, %s158
      %p162 = pneg %p156
      %p163 = scmp.eq.s32.totalorder %s20, 3
      %p164 = por %p162, %p163
      %p165 = scmp.ne.s32.totalorder %s157, %s160
      %p166 = scmp.eq.s32.totalorder %s20, 0
      %p167 = por %p165, %p166
      %p168 = scmp.ne.s32.totalorder %s157, %s160
      %p169 = scmp.eq.s32.totalorder %s25, 3
      %p170 = por %p168, %p169
      %p171 = scmp.ne.s32.totalorder %s160, %s161
      %p172 = scmp.eq.s32.totalorder %s25, 0
      %p173 = por %p171, %p172
      %p174 = scmp.ne.s32.totalorder %s160, %s161
      %p175 = scmp.eq.s32.totalorder %s26, 3
      %p176 = por %p174, %p175
      %p178 = scmp.ne.s32.totalorder %s161, %s177
      %p179 = scmp.eq.s32.totalorder %s26, 0
      %p180 = por %p178, %p179
      %s181 = ssub.s32 %s28, %s35
      %p182 = scmp.eq.s32.totalorder %s181, 0
      %s184 = sadd.s32 %s183, 1
      %s185 = scalar_select %p182, %s183, %s184
      %p188 = pneg %p182
      %p189 = scmp.eq.s32.totalorder %s20, 3
      %p190 = por %p188, %p189
      %p191 = scmp.ne.s32.totalorder %s183, %s186
      %p192 = scmp.eq.s32.totalorder %s20, 0
      %p193 = por %p191, %p192
      %p194 = scmp.ne.s32.totalorder %s183, %s186
      %p195 = scmp.eq.s32.totalorder %s25, 3
      %p196 = por %p194, %p195
      %p197 = scmp.ne.s32.totalorder %s186, %s187
      %p198 = scmp.eq.s32.totalorder %s25, 0
      %p199 = por %p197, %p198
      %p200 = scmp.ne.s32.totalorder %s186, %s187
      %p201 = scmp.eq.s32.totalorder %s26, 3
      %p202 = por %p200, %p201
      %p204 = scmp.ne.s32.totalorder %s187, %s203
      %p205 = scmp.eq.s32.totalorder %s26, 0
      %p206 = por %p204, %p205
      %s207 = ssub.s32 %s28, %s35
      %p208 = scmp.eq.s32.totalorder %s207, 0
      %s210 = sadd.s32 %s209, 1
      %s211 = scalar_select %p208, %s209, %s210
      %p214 = pneg %p208
      %p215 = scmp.eq.s32.totalorder %s20, 3
      %p216 = por %p214, %p215
      %p217 = scmp.ne.s32.totalorder %s209, %s212
      %p218 = scmp.eq.s32.totalorder %s20, 0
      %p219 = por %p217, %p218
      %p220 = scmp.ne.s32.totalorder %s209, %s212
      %p221 = scmp.eq.s32.totalorder %s25, 3
      %p222 = por %p220, %p221
      %p223 = scmp.ne.s32.totalorder %s212, %s213
      %p224 = scmp.eq.s32.totalorder %s25, 0
      %p225 = por %p223, %p224
      %p226 = scmp.ne.s32.totalorder %s212, %s213
      %p227 = scmp.eq.s32.totalorder %s26, 3
      %p228 = por %p226, %p227
      %p230 = scmp.ne.s32.totalorder %s213, %s229
      %p231 = scmp.eq.s32.totalorder %s26, 0
      %p232 = por %p230, %p231
      %s233 = ssub.s32 %s27, %s39
      %p234 = scmp.eq.s32.totalorder %s233, 0
      %s236 = sadd.s32 %s235, 1
      %s237 = scalar_select %p234, %s235, %s236
      %p240 = pneg %p234
      %p241 = scmp.eq.s32.totalorder %s20, 3
      %p242 = por %p240, %p241
      %p243 = scmp.ne.s32.totalorder %s235, %s238
      %p244 = scmp.eq.s32.totalorder %s20, 0
      %p245 = por %p243, %p244
      %p246 = scmp.ne.s32.totalorder %s235, %s238
      %p247 = scmp.eq.s32.totalorder %s25, 3
      %p248 = por %p246, %p247
      %p249 = scmp.ne.s32.totalorder %s238, %s239
      %p250 = scmp.eq.s32.totalorder %s25, 0
      %p251 = por %p249, %p250
      %p252 = scmp.ne.s32.totalorder %s238, %s239
      %p253 = scmp.eq.s32.totalorder %s26, 3
      %p254 = por %p252, %p253
      %p256 = scmp.ne.s32.totalorder %s239, %s255
      %p257 = scmp.eq.s32.totalorder %s26, 0
      %p258 = por %p256, %p257
      %p259 = scmp.le.s32.totalorder 1, %s20
      %p260 = scmp.lt.s32.totalorder %s20, 5
      %p261 = pnand %p259, %p260
      %p262 = pneg %p261
      // Predicated region
      $region9: #{tpu_custom_call.1} parent=5 // pred_check
        _
      $region10: #{tpu_custom_call.1} parent=5 // pred_check_branch
        %264 = sbr.rel (%p261) target = $region12
      $region11: #{tpu_custom_call.1} parent=5 // pred_region
        %s265 = ssub.s32 %s20, 1
        // Predicated region
        $region13: #{tpu_custom_call.1} parent=11 // pred_check
          %p266 = pneg %p79
        $region14: #{tpu_custom_call.1} parent=11 // pred_check_branch
          %268 = sbr.rel (%p266) target = $region16
        $region15: #{tpu_custom_call.1} parent=11 // pred_region
          _
        $region16: #{tpu_custom_call.1} parent=11 // pred_fallthru
          _
        // Predicated region
        $region17: #{tpu_custom_call.1} parent=11 // pred_check
          %p269 = pneg %p126
        $region18: #{tpu_custom_call.1} parent=11 // pred_check_branch
          %271 = sbr.rel (%p269) target = $region20
        $region19: #{tpu_custom_call.1} parent=11 // pred_region
          _
        $region20: #{tpu_custom_call.1} parent=11 // pred_fallthru
          _
        // Predicated region
        $region21: #{tpu_custom_call.1} parent=11 // pred_check
          %p272 = pneg %p147
        $region22: #{tpu_custom_call.1} parent=11 // pred_check_branch
          %274 = sbr.rel (%p272) target = $region24
        $region23: #{tpu_custom_call.1} parent=11 // pred_region
          _
        $region24: #{tpu_custom_call.1} parent=11 // pred_fallthru
          _
      $region12: #{tpu_custom_call.1} parent=5 // pred_fallthru
        _
      %p275 = scmp.lt.s32.totalorder %s20, 4
      // Predicated region
      $region25: #{tpu_custom_call.1} parent=5 // pred_check
        %p276 = pneg %p275
      $region26: #{tpu_custom_call.1} parent=5 // pred_check_branch
        %278 = sbr.rel (%p276) target = $region28
      $region27: #{tpu_custom_call.1} parent=5 // pred_region
        // Predicated region
        $region29: #{tpu_custom_call.1} parent=27 // pred_check
          %p279 = pneg %p52
        $region30: #{tpu_custom_call.1} parent=27 // pred_check_branch
          %281 = sbr.rel (%p279) target = $region32
        $region31: #{tpu_custom_call.1} parent=27 // pred_region
          %p282 = scmp.lt.s32.totalorder %s27, 1
          %s283 = scalar_select %p282, %s27, 1
          %s284 = smul.addr %s283, 8
          %s285 = scalar_lea.vmem %s0, %s284
        $region32: #{tpu_custom_call.1} parent=27 // pred_fallthru
          _
        // Predicated region
        $region33: #{tpu_custom_call.1} parent=27 // pred_check
          %p286 = pneg %p99
        $region34: #{tpu_custom_call.1} parent=27 // pred_check_branch
          %288 = sbr.rel (%p286) target = $region36
        $region35: #{tpu_custom_call.1} parent=27 // pred_region
          %p289 = scmp.lt.s32.totalorder %s27, 1
          %s290 = scalar_select %p289, %s27, 1
          %s291 = scalar_lea.vmem %s2, %s290
        $region36: #{tpu_custom_call.1} parent=27 // pred_fallthru
          _
        // Predicated region
        $region37: #{tpu_custom_call.1} parent=27 // pred_check
          %p292 = pneg %p167
        $region38: #{tpu_custom_call.1} parent=27 // pred_check_branch
          %294 = sbr.rel (%p292) target = $region40
        $region39: #{tpu_custom_call.1} parent=27 // pred_region
          %p295 = scmp.lt.s32.totalorder %s28, 1
          %s296 = scalar_select %p295, %s28, 1
          %s297 = smul.addr %s296, 4
          %s298 = smul.addr %s297, 4
          %s299 = scalar_lea.vmem %s5, %s298
        $region40: #{tpu_custom_call.1} parent=27 // pred_fallthru
          _
        // Predicated region
        $region41: #{tpu_custom_call.1} parent=27 // pred_check
          %p300 = pneg %p193
        $region42: #{tpu_custom_call.1} parent=27 // pred_check_branch
          %302 = sbr.rel (%p300) target = $region44
        $region43: #{tpu_custom_call.1} parent=27 // pred_region
          %s303 = sand.u32 %s183, 1
          %s304 = scalar_lea.sflag [#allocation4], %s303
          %s305 = sand.u32 %s183, 1
          %s306 = smul.addr %s305, 48
          %s307 = scalar_lea.vmem [#allocation3], %s306
          %s309 = ssub.s32 768, 768
          %310 = vsyncadd %s304, %s309
          %s311 = smul.addr %s28, 12
          %s312 = smul.addr %s311, 64
          %s313 = scalar_lea.hbm %s6, %s312
          %s314 = sshll.u32 %s307, 4
          %s315 = int_to_ptr.vmem [resolvable:$true] %s314
          %320 = dma.hbm_to_vmem [thread:$0]  %s313, 768, %s315, %s304, 64, 64, 4
        $region44: #{tpu_custom_call.1} parent=27 // pred_fallthru
          _
        // Predicated region
        $region45: #{tpu_custom_call.1} parent=27 // pred_check
          %p321 = pneg %p219
        $region46: #{tpu_custom_call.1} parent=27 // pred_check_branch
          %323 = sbr.rel (%p321) target = $region48
        $region47: #{tpu_custom_call.1} parent=27 // pred_region
          %p324 = scmp.lt.s32.totalorder %s28, 1
          %s325 = scalar_select %p324, %s28, 1
          %s326 = smul.addr %s325, 2
          %s327 = smul.addr %s326, 8
          %s328 = scalar_lea.vmem %s7, %s327
        $region48: #{tpu_custom_call.1} parent=27 // pred_fallthru
          _
      $region28: #{tpu_custom_call.1} parent=5 // pred_fallthru
        _
      %p329 = scmp.le.s32.totalorder 1, %s20
      %p330 = scmp.lt.s32.totalorder %s20, 5
      %p331 = pnand %p329, %p330
      %p332 = pneg %p331
      // Predicated region
      $region49: #{tpu_custom_call.1} parent=5 // pred_check
        _
      $region50: #{tpu_custom_call.1} parent=5 // pred_check_branch
        %334 = sbr.rel (%p331) target = $region52
      $region51: #{tpu_custom_call.1} parent=5 // pred_region
        %s335 = ssub.s32 %s20, 1
        %s336 = sand.u32 %s186, 1
        %s337 = scalar_lea.sflag [#allocation4], %s336
        %s338 = sand.u32 %s186, 1
        %s339 = smul.addr %s338, 48
        %s340 = scalar_lea.vmem [#allocation3], %s339
        // Predicated region
        $region53: #{tpu_custom_call.1} parent=51 // pred_check
          %p341 = pneg %p199
        $region54: #{tpu_custom_call.1} parent=51 // pred_check_branch
          %343 = sbr.rel (%p341) target = $region56
        $region55: #{tpu_custom_call.1} parent=51 // pred_region
          %344 = dma.done %s337, 768
        $region56: #{tpu_custom_call.1} parent=51 // pred_fallthru
          _
        %p345 = scmp.lt.s32.totalorder %s29, 1
        %s346 = scalar_select %p345, %s29, 1
        %s347 = smul.addr %s346, 8
        %s348 = scalar_lea.vmem %s0, %s347
        %p349 = pneg %p58
        %p350 = pneg %p55
        %p351 = pneg %p79
        %p352 = pneg %p76
        %p353 = scmp.lt.s32.totalorder %s29, 1
        %s354 = scalar_select %p353, %s29, 1
        %s355 = scalar_lea.vmem %s2, %s354
        %p356 = pneg %p105
        %p357 = pneg %p102
        %p358 = pneg %p126
        %p359 = pneg %p123
        %p360 = pneg %p147
        %p361 = pneg %p144
        %p362 = scmp.lt.s32.totalorder %s30, 1
        %s363 = scalar_select %p362, %s30, 1
        %s364 = smul.addr %s363, 4
        %s365 = smul.addr %s364, 4
        %s366 = scalar_lea.vmem %s5, %s365
        %p367 = pneg %p173
        %p368 = pneg %p170
        %s369 = sand.u32 %s186, 1
        %s370 = scalar_lea.sflag [#allocation4], %s369
        %s371 = sand.u32 %s186, 1
        %s372 = smul.addr %s371, 48
        %s373 = scalar_lea.vmem [#allocation3], %s372
        %p374 = pneg %p199
        %p375 = pneg %p196
        %p376 = scmp.lt.s32.totalorder %s30, 1
        %s377 = scalar_select %p376, %s30, 1
        %s378 = smul.addr %s377, 2
        %s379 = smul.addr %s378, 8
        %s380 = scalar_lea.vmem %s7, %s379
        %p381 = pneg %p225
        %p382 = pneg %p222
        %p383 = pneg %p251
        %p384 = pneg %p248
        %s385 = sand.u32 %s238, 1
        %s386 = scalar_lea.sflag [#allocation5], %s385
        %s387 = sand.u32 %s238, 1
        %s388 = smul.addr %s387, 16
        %s389 = scalar_lea.vmem [#allocation6], %s388
        %p390 = scmp.lt.s32.totalorder %s29, 1
        %s391 = scalar_select %p390, %s29, 1
        %s392 = smul.addr %s391, 8
        %s393 = scalar_lea.vmem %s0, %s392
        %p394 = scmp.lt.s32.totalorder %s29, 1
        %s395 = scalar_select %p394, %s29, 1
        %s396 = scalar_lea.vmem %s2, %s395
        %p397 = scmp.lt.s32.totalorder %s30, 1
        %s398 = scalar_select %p397, %s30, 1
        %s399 = smul.addr %s398, 4
        %s400 = smul.addr %s399, 4
        %s401 = scalar_lea.vmem %s5, %s400
        %p402 = scmp.lt.s32.totalorder %s30, 1
        %s403 = scalar_select %p402, %s30, 1
        %s404 = smul.addr %s403, 2
        %s405 = smul.addr %s404, 8
        %s406 = scalar_lea.vmem %s7, %s405
        %p408 = scmp.eq.s32.totalorder %s30, 0
        // Predicated region
        $region57: #{tpu_custom_call.1} parent=51 // pred_check
          %p409 = pneg %p408
        $region58: #{tpu_custom_call.1} parent=51 // pred_check_branch
          %411 = sbr.rel (%p409) target = $region60
        $region59: #{tpu_custom_call.1} parent=51 // pred_region
          %v412 = vld [vmem:[%s393] sm:$0xff]
          %v413 = vld [vmem:[%s3] sm:$0x1]
          %v414 = vld [vmem:[%s4] sm:$0x1]
          %vm415 = vcmask 261120
          %v416 = vsel %vm415, %v412, 0.0
          %417 = vadd.xlane.f32.xlu0 %v416
          %v418 = vpop.xlane.xlu0 %417
          %v419 = vrcp.pop 32.0
          %v420 = vmul.f32 %v418, %v419
          %v421 = vsub.f32 %v412, %v420
          %v422 = vmul.f32 %v421, %v421
          %v423 = vsel %vm415, %v422, 0.0
          %424 = vadd.xlane.f32.xlu0 %v423
          %v425 = vpop.xlane.xlu0 %424
          %v426 = vmul.f32 %v425, %v419
          %v427 = vadd.f32 %v426, 1e-05
          %v428 = vrsqrt.pop %v427
          %v429 = vmul.f32 %v421, %v428
          %v431 = vlaneseq
          %v432 = vshrl.u32 %v431, 7
          %v433 = vsub.s32 0, %v432
          %v434 = vrot.slane %v413, %v433
          %v436 = vmul.f32 %v429, %v434
          %v438 = vlaneseq
          %v439 = vshrl.u32 %v438, 7
          %v440 = vsub.s32 0, %v439
          %v441 = vrot.slane %v414, %v440
          %v443 = vadd.f32 %v436, %v441
          %v444 = vld [vmem:[%s1] sm:$0x1]
          %vm445 = vcmask 253952
          %446 = vst.msk [vmem:[#allocation2] sm:$0x1] %vm445, %v444
          %447 = vst.msk [vmem:[#allocation2 + $0x1] sm:$0xff] %vm415, %v443
          %vm448 = vcmask 260096
          %449 = vst.msk [vmem:[#allocation2 + $0x9] sm:$0x7f] %vm448, 0.0
        $region60: #{tpu_custom_call.1} parent=51 // pred_fallthru
          _
        %v450 = vld [vmem:[%s406] sm:$0xff]
        %v451 = vld [vmem:[%s406 + $0x8] sm:$0x3]
        %v452 = vld [vmem:[%s340] sm:$0xf]
        %v453 = vld [vmem:[%s340 + $0x4] sm:$0xf]
        %v454 = vld [vmem:[%s340 + $0x8] sm:$0xf]
        %v455 = vld [vmem:[%s340 + $0xc] sm:$0xf]
        %v456 = vld [vmem:[%s340 + $0x10] sm:$0xf]
        %v457 = vld [vmem:[%s340 + $0x14] sm:$0xf]
        %v458 = vld [vmem:[%s340 + $0x18] sm:$0xf]
        %v459 = vld [vmem:[%s340 + $0x1c] sm:$0xf]
        %v460 = vld [vmem:[%s340 + $0x20] sm:$0xf]
        %v461 = vld [vmem:[%s340 + $0x24] sm:$0xf]
        %v462 = vld [vmem:[%s340 + $0x28] sm:$0xf]
        %v463 = vld [vmem:[%s340 + $0x2c] sm:$0xf]
        %v464 = vld [vmem:[#allocation2] sm:$0xff]
        %v465 = vld [vmem:[#allocation2 + $0x8] sm:$0xff]
        %v466 = vpack.c.bf16 %v465, %v464
        %v467 = vld [vmem:[%s401] sm:$0xf]
        %v468 = vld [vmem:[%s401 + $0x4] sm:$0xf]
        %v469 = vld [vmem:[%s401 + $0x8] sm:$0xf]
        %v470 = vld [vmem:[%s401 + $0xc] sm:$0xf]
        %v475 = vunpack.c.l.b16 %v467
        %v476 = vunpack.c.l.b16 %v468
        %v477 = vunpack.c.l.b16 %v469
        %v478 = vunpack.c.l.b16 %v470
        %v479 = vpack.c.b16 %v476, %v475
        %v480 = vpack.c.b16 %v478, %v477
        %vm483 = vcmask 261120
        %v485 = vsel %vm483, %v466, 0
        %487 = vmatprep.subr.bf16.mxu0 0
        %488 = vmatpush1.bf16.msra.mxu0 %v479
        %489 = vmatprep.subr.bf16.mxu0 0
        %490 = vmatpush1.bf16.msra.mxu0 %v480
        %491 = vmatprep.subr.bf16.mxu0 0
        %492 = vmatpush1.bf16.msra.mxu0 0
        %493 = vmatprep.subr.bf16.mxu0 0
        %494 = vmatpush1.bf16.msra.mxu0 0
        %495 = vmatprep.subr.bf16.mxu0 0
        %496 = vmatpush1.bf16.msra.mxu0 0
        %497 = vmatprep.subr.bf16.mxu0 0
        %498 = vmatpush1.bf16.msra.mxu0 0
        %499 = vmatprep.subr.bf16.mxu0 0
        %500 = vmatpush1.bf16.msra.mxu0 0
        %501 = vmatprep.subr.bf16.mxu0 0
        %502 = vmatpush1.bf16.msra.mxu0 0
        %503 = vmatprep.subr.bf16.mxu0 0
        %504 = vmatpush1.bf16.msra.mxu0 0
        %505 = vmatprep.subr.bf16.mxu0 0
        %506 = vmatpush1.bf16.msra.mxu0 0
        %507 = vmatprep.subr.bf16.mxu0 0
        %508 = vmatpush1.bf16.msra.mxu0 0
        %509 = vmatprep.subr.bf16.mxu0 0
        %510 = vmatpush1.bf16.msra.mxu0 0
        %511 = vmatprep.subr.bf16.mxu0 0
        %512 = vmatpush1.bf16.msra.mxu0 0
        %513 = vmatprep.subr.bf16.mxu0 0
        %514 = vmatpush1.bf16.msra.mxu0 0
        %515 = vmatprep.subr.bf16.mxu0 0
        %516 = vmatpush1.bf16.msra.mxu0 0
        %517 = vmatprep.subr.bf16.mxu0 0
        %518 = vmatpush1.bf16.msra.mxu0 0
        %519 = vmatprep.mubr.bf16.mxu0 0
        %520 = vmatmul.mubr.bf16.gmra.mrb[0].mxu0 %v485
        %v521 = vpop.f32.mrb[0].mxu0
        %v522 = vadd.f32 0.0, %v521
        %v523 = vpop.f32.mrb[0].mxu0
        %v524 = vpop.f32.mrb[0].mxu0
        %v525 = vadd.f32 0.0, %v524
        %v526 = vpop.f32.mrb[0].mxu0
        %527 = vdwg.mxu0
        %v528 = vlaneseq
        %v529 = vshrl.u32 %v528, 7
        %v530 = vsub.s32 0, %v529
        %v531 = vrot.slane %v450, %v530
        %v532 = vadd.f32 %v522, %v531
        %v533 = vadd.f32 %v525, %v531
        %v534 = vlaneseq
        %v535 = vshrl.u32 %v534, 7
        %v536 = vsub.s32 1, %v535
        %v537 = vrot.slane %v450, %v536
        %539 = vrot.lane.b32.xlu0 %v537, 32
        %v540 = vpop.permute.xlu0 %539
        %v542 = vadd.f32 %v522, %v540
        %v543 = vadd.f32 %v525, %v540
        %v544 = vlaneseq
        %v545 = vshrl.u32 %v544, 7
        %v546 = vsub.s32 2, %v545
        %v547 = vrot.slane %v450, %v546
        %549 = vrot.lane.b32.xlu0 %v547, 64
        %v550 = vpop.permute.xlu0 %549
        %v552 = vadd.f32 %v522, %v550
        %v553 = vadd.f32 %v525, %v550
        %v554 = vld [vmem:[%s396] sm:$0x1]
        %v555 = vpack.c.bf16 %v533, %v532
        %v556 = vpack.c.bf16 %v543, %v542
        %v557 = vpack.c.bf16 %v553, %v552
        %559 = vrot.lane.b32.xlu0 %v556, 96
        %v560 = vpop.permute.xlu0 %559
        %vm561 = vcmask 130048
        %v563 = vsel %vm561, %v555, 0
        %v566 = vsel %vm561, %v560, 0
        %568 = vmatprep.subr.bf16.mxu0 0
        %569 = vmatpush1.bf16.xpose.msra.mxu0 %v566
        %570 = vmatprep.subr.bf16.mxu0 0
        %571 = vmatpush1.bf16.xpose.msra.mxu0 0
        %572 = vmatprep.subr.bf16.mxu0 0
        %573 = vmatpush1.bf16.xpose.msra.mxu0 0
        %574 = vmatprep.subr.bf16.mxu0 0
        %575 = vmatpush1.bf16.xpose.msra.mxu0 0
        %576 = vmatprep.subr.bf16.mxu0 0
        %577 = vmatpush1.bf16.xpose.msra.mxu0 0
        %578 = vmatprep.subr.bf16.mxu0 0
        %579 = vmatpush1.bf16.xpose.msra.mxu0 0
        %580 = vmatprep.subr.bf16.mxu0 0
        %581 = vmatpush1.bf16.xpose.msra.mxu0 0
        %582 = vmatprep.subr.bf16.mxu0 0
        %583 = vmatpush1.bf16.xpose.msra.mxu0 0
        %584 = vmatprep.subr.bf16.mxu0 0
        %585 = vmatpush1.bf16.xpose.msra.mxu0 0
        %586 = vmatprep.subr.bf16.mxu0 0
        %587 = vmatpush1.bf16.xpose.msra.mxu0 0
        %588 = vmatprep.subr.bf16.mxu0 0
        %589 = vmatpush1.bf16.xpose.msra.mxu0 0
        %590 = vmatprep.subr.bf16.mxu0 0
        %591 = vmatpush1.bf16.xpose.msra.mxu0 0
        %592 = vmatprep.subr.bf16.mxu0 0
        %593 = vmatpush1.bf16.xpose.msra.mxu0 0
        %594 = vmatprep.subr.bf16.mxu0 0
        %595 = vmatpush1.bf16.xpose.msra.mxu0 0
        %596 = vmatprep.subr.bf16.mxu0 0
        %597 = vmatpush1.bf16.xpose.msra.mxu0 0
        %598 = vmatprep.subr.bf16.mxu0 0
        %599 = vmatpush1.bf16.xpose.msra.mxu0 0
        %600 = vmatprep.mubr.bf16.mxu0 0
        %601 = vmatmul.mubr.bf16.gmra.mrb[0].mxu0 %v563
        %v602 = vpop.f32.mrb[0].mxu0
        %v603 = vadd.f32 0.0, %v602
        %v604 = vpop.f32.mrb[0].mxu0
        %v605 = vpop.f32.mrb[0].mxu0
        %v606 = vadd.f32 0.0, %v605
        %v607 = vpop.f32.mrb[0].mxu0
        %608 = vdwg.mxu0
        %v609 = vmul.f32 %v603, 0.25
        %v610 = vmul.f32 %v606, 0.25
        %v612 = vlaneseq
        %v613 = vshrl.u32 %v612, 7
        %v614 = vsub.s32 0, %v613
        %v615 = vrot.slane %v554, %v614
        %v617 = vadd.f32 %v609, %v615
        %v618 = vadd.f32 %v610, %v615
        %v619 = vsel %vm561, %v617, -inf
        %620 = vmax.xlane.f32.xlu0 %v619
        %v621 = vpop.xlane.xlu0 %620
        %v622 = vsel %vm561, %v618, -inf
        %623 = vmax.xlane.f32.xlu0 %v622
        %v624 = vpop.xlane.xlu0 %623
        %v625 = vsub.f32 %v617, %v621
        %v626 = vsub.f32 %v618, %v624
        %v627 = vmul.f32 %v625, 1.442695
        %v628 = vpow.pop %v627
        %v629 = vmul.f32 %v626, 1.442695
        %v630 = vpow.pop %v629
        %v631 = vsel %vm561, %v628, 0.0
        %632 = vadd.xlane.f32.xlu0 %v631
        %v633 = vpop.xlane.xlu0 %632
        %v634 = vsel %vm561, %v630, 0.0
        %635 = vadd.xlane.f32.xlu0 %v634
        %v636 = vpop.xlane.xlu0 %635
        %v637 = vrcp.pop %v633
        %v638 = vrcp.pop %v636
        %v639 = vmul.f32 %v628, %v637
        %v640 = vmul.f32 %v630, %v638
        %v641 = vpack.c.bf16 %v640, %v639
        %643 = vrot.lane.b32.xlu0 %v557, 64
        %v644 = vpop.permute.xlu0 %643
        %v647 = vsel %vm561, %v641, 0
        %649 = vmatprep.subr.bf16.mxu0 0
        %650 = vmatpush1.bf16.msra.mxu0 %v644
        %651 = vmatprep.subr.bf16.mxu0 0
        %652 = vmatpush1.bf16.msra.mxu0 0
        %653 = vmatprep.subr.bf16.mxu0 0
        %654 = vmatpush1.bf16.msra.mxu0 0
        %655 = vmatprep.subr.bf16.mxu0 0
        %656 = vmatpush1.bf16.msra.mxu0 0
        %657 = vmatprep.subr.bf16.mxu0 0
        %658 = vmatpush1.bf16.msra.mxu0 0
        %659 = vmatprep.subr.bf16.mxu0 0
        %660 = vmatpush1.bf16.msra.mxu0 0
        %661 = vmatprep.subr.bf16.mxu0 0
        %662 = vmatpush1.bf16.msra.mxu0 0
        %663 = vmatprep.subr.bf16.mxu0 0
        %664 = vmatpush1.bf16.msra.mxu0 0
        %665 = vmatprep.subr.bf16.mxu0 0
        %666 = vmatpush1.bf16.msra.mxu0 0
        %667 = vmatprep.subr.bf16.mxu0 0
        %668 = vmatpush1.bf16.msra.mxu0 0
        %669 = vmatprep.subr.bf16.mxu0 0
        %670 = vmatpush1.bf16.msra.mxu0 0
        %671 = vmatprep.subr.bf16.mxu0 0
        %672 = vmatpush1.bf16.msra.mxu0 0
        %673 = vmatprep.subr.bf16.mxu0 0
        %674 = vmatpush1.bf16.msra.mxu0 0
        %675 = vmatprep.subr.bf16.mxu0 0
        %676 = vmatpush1.bf16.msra.mxu0 0
        %677 = vmatprep.subr.bf16.mxu0 0
        %678 = vmatpush1.bf16.msra.mxu0 0
        %679 = vmatprep.subr.bf16.mxu0 0
        %680 = vmatpush1.bf16.msra.mxu0 0
        %681 = vmatprep.mubr.bf16.mxu0 0
        %682 = vmatmul.mubr.bf16.gmra.mrb[0].mxu0 %v647
        %v683 = vpop.f32.mrb[0].mxu0
        %v684 = vadd.f32 0.0, %v683
        %v685 = vpop.f32.mrb[0].mxu0
        %v686 = vpop.f32.mrb[0].mxu0
        %v687 = vadd.f32 0.0, %v686
        %v688 = vpop.f32.mrb[0].mxu0
        %689 = vdwg.mxu0
        %v690 = vpack.c.bf16 %v687, %v684
        %692 = vrot.lane.b32.xlu0 %v555, 112
        %v693 = vpop.permute.xlu0 %692
        %694 = vrot.lane.b32.xlu0 %v556, 80
        %v695 = vpop.permute.xlu0 %694
        %v697 = vsel %vm561, %v693, 0
        %v700 = vsel %vm561, %v695, 0
        %702 = vmatprep.subr.bf16.mxu0 0
        %703 = vmatpush1.bf16.xpose.msra.mxu0 %v700
        %704 = vmatprep.subr.bf16.mxu0 0
        %705 = vmatpush1.bf16.xpose.msra.mxu0 0
        %706 = vmatprep.subr.bf16.mxu0 0
        %707 = vmatpush1.bf16.xpose.msra.mxu0 0
        %708 = vmatprep.subr.bf16.mxu0 0
        %709 = vmatpush1.bf16.xpose.msra.mxu0 0
        %710 = vmatprep.subr.bf16.mxu0 0
        %711 = vmatpush1.bf16.xpose.msra.mxu0 0
        %712 = vmatprep.subr.bf16.mxu0 0
        %713 = vmatpush1.bf16.xpose.msra.mxu0 0
        %714 = vmatprep.subr.bf16.mxu0 0
        %715 = vmatpush1.bf16.xpose.msra.mxu0 0
        %716 = vmatprep.subr.bf16.mxu0 0
        %717 = vmatpush1.bf16.xpose.msra.mxu0 0
        %718 = vmatprep.subr.bf16.mxu0 0
        %719 = vmatpush1.bf16.xpose.msra.mxu0 0
        %720 = vmatprep.subr.bf16.mxu0 0
        %721 = vmatpush1.bf16.xpose.msra.mxu0 0
        %722 = vmatprep.subr.bf16.mxu0 0
        %723 = vmatpush1.bf16.xpose.msra.mxu0 0
        %724 = vmatprep.subr.bf16.mxu0 0
        %725 = vmatpush1.bf16.xpose.msra.mxu0 0
        %726 = vmatprep.subr.bf16.mxu0 0
        %727 = vmatpush1.bf16.xpose.msra.mxu0 0
        %728 = vmatprep.subr.bf16.mxu0 0
        %729 = vmatpush1.bf16.xpose.msra.mxu0 0
        %730 = vmatprep.subr.bf16.mxu0 0
        %731 = vmatpush1.bf16.xpose.msra.mxu0 0
        %732 = vmatprep.subr.bf16.mxu0 0
        %733 = vmatpush1.bf16.xpose.msra.mxu0 0
        %734 = vmatprep.mubr.bf16.mxu0 0
        %735 = vmatmul.mubr.bf16.gmra.mrb[0].mxu0 %v697
        %v736 = vpop.f32.mrb[0].mxu0
        %v737 = vadd.f32 0.0, %v736
        %v738 = vpop.f32.mrb[0].mxu0
        %v739 = vpop.f32.mrb[0].mxu0
        %v740 = vadd.f32 0.0, %v739
        %v741 = vpop.f32.mrb[0].mxu0
        %742 = vdwg.mxu0
        %v743 = vmul.f32 %v737, 0.25
        %v744 = vmul.f32 %v740, 0.25
        %v745 = vadd.f32 %v743, %v615
        %v746 = vadd.f32 %v744, %v615
        %v747 = vsel %vm561, %v745, -inf
        %748 = vmax.xlane.f32.xlu0 %v747
        %v749 = vpop.xlane.xlu0 %748
        %v750 = vsel %vm561, %v746, -inf
        %751 = vmax.xlane.f32.xlu0 %v750
        %v752 = vpop.xlane.xlu0 %751
        %v753 = vsub.f32 %v745, %v749
        %v754 = vsub.f32 %v746, %v752
        %v755 = vmul.f32 %v753, 1.442695
        %v756 = vpow.pop %v755
        %v757 = vmul.f32 %v754, 1.442695
        %v758 = vpow.pop %v757
        %v759 = vsel %vm561, %v756, 0.0
        %760 = vadd.xlane.f32.xlu0 %v759
        %v761 = vpop.xlane.xlu0 %760
        %v762 = vsel %vm561, %v758, 0.0
        %763 = vadd.xlane.f32.xlu0 %v762
        %v764 = vpop.xlane.xlu0 %763
        %v765 = vrcp.pop %v761
        %v766 = vrcp.pop %v764
        %v767 = vmul.f32 %v756, %v765
        %v768 = vmul.f32 %v758, %v766
        %v769 = vpack.c.bf16 %v768, %v767
        %770 = vrot.lane.b32.xlu0 %v557, 48
        %v771 = vpop.permute.xlu0 %770
        %v774 = vsel %vm561, %v769, 0
        %776 = vmatprep.subr.bf16.mxu0 0
        %777 = vmatpush1.bf16.msra.mxu0 %v771
        %778 = vmatprep.subr.bf16.mxu0 0
        %779 = vmatpush1.bf16.msra.mxu0 0
        %780 = vmatprep.subr.bf16.mxu0 0
        %781 = vmatpush1.bf16.msra.mxu0 0
        %782 = vmatprep.subr.bf16.mxu0 0
        %783 = vmatpush1.bf16.msra.mxu0 0
        %784 = vmatprep.subr.bf16.mxu0 0
        %785 = vmatpush1.bf16.msra.mxu0 0
        %786 = vmatprep.subr.bf16.mxu0 0
        %787 = vmatpush1.bf16.msra.mxu0 0
        %788 = vmatprep.subr.bf16.mxu0 0
        %789 = vmatpush1.bf16.msra.mxu0 0
        %790 = vmatprep.subr.bf16.mxu0 0
        %791 = vmatpush1.bf16.msra.mxu0 0
        %792 = vmatprep.subr.bf16.mxu0 0
        %793 = vmatpush1.bf16.msra.mxu0 0
        %794 = vmatprep.subr.bf16.mxu0 0
        %795 = vmatpush1.bf16.msra.mxu0 0
        %796 = vmatprep.subr.bf16.mxu0 0
        %797 = vmatpush1.bf16.msra.mxu0 0
        %798 = vmatprep.subr.bf16.mxu0 0
        %799 = vmatpush1.bf16.msra.mxu0 0
        %800 = vmatprep.subr.bf16.mxu0 0
        %801 = vmatpush1.bf16.msra.mxu0 0
        %802 = vmatprep.subr.bf16.mxu0 0
        %803 = vmatpush1.bf16.msra.mxu0 0
        %804 = vmatprep.subr.bf16.mxu0 0
        %805 = vmatpush1.bf16.msra.mxu0 0
        %806 = vmatprep.subr.bf16.mxu0 0
        %807 = vmatpush1.bf16.msra.mxu0 0
        %808 = vmatprep.mubr.bf16.mxu0 0
        %809 = vmatmul.mubr.bf16.gmra.mrb[0].mxu0 %v774
        %v810 = vpop.f32.mrb[0].mxu0
        %v811 = vadd.f32 0.0, %v810
        %v812 = vpop.f32.mrb[0].mxu0
        %v813 = vpop.f32.mrb[0].mxu0
        %v814 = vadd.f32 0.0, %v813
        %v815 = vpop.f32.mrb[0].mxu0
        %816 = vdwg.mxu0
        %v817 = vpack.c.bf16 %v814, %v811
        %v820 = vunpack.c.l.b16 %v454
        %v821 = vunpack.c.l.b16 %v455
        %v822 = vpack.c.b16 %v821, %v820
        %v825 = vsel %vm561, %v817, 0
        %827 = vmatprep.subr.bf16.mxu0 0
        %828 = vmatpush1.bf16.msra.mxu0 %v822
        %829 = vmatprep.subr.bf16.mxu0 0
        %830 = vmatpush1.bf16.msra.mxu0 0
        %831 = vmatprep.subr.bf16.mxu0 0
        %832 = vmatpush1.bf16.msra.mxu0 0
        %833 = vmatprep.subr.bf16.mxu0 0
        %834 = vmatpush1.bf16.msra.mxu0 0
        %835 = vmatprep.subr.bf16.mxu0 0
        %836 = vmatpush1.bf16.msra.mxu0 0
        %837 = vmatprep.subr.bf16.mxu0 0
        %838 = vmatpush1.bf16.msra.mxu0 0
        %839 = vmatprep.subr.bf16.mxu0 0
        %840 = vmatpush1.bf16.msra.mxu0 0
        %841 = vmatprep.subr.bf16.mxu0 0
        %842 = vmatpush1.bf16.msra.mxu0 0
        %843 = vmatprep.subr.bf16.mxu0 0
        %844 = vmatpush1.bf16.msra.mxu0 0
        %845 = vmatprep.subr.bf16.mxu0 0
        %846 = vmatpush1.bf16.msra.mxu0 0
        %847 = vmatprep.subr.bf16.mxu0 0
        %848 = vmatpush1.bf16.msra.mxu0 0
        %849 = vmatprep.subr.bf16.mxu0 0
        %850 = vmatpush1.bf16.msra.mxu0 0
        %851 = vmatprep.subr.bf16.mxu0 0
        %852 = vmatpush1.bf16.msra.mxu0 0
        %853 = vmatprep.subr.bf16.mxu0 0
        %854 = vmatpush1.bf16.msra.mxu0 0
        %855 = vmatprep.subr.bf16.mxu0 0
        %856 = vmatpush1.bf16.msra.mxu0 0
        %857 = vmatprep.subr.bf16.mxu0 0
        %858 = vmatpush1.bf16.msra.mxu0 0
        %859 = vmatprep.mubr.bf16.mxu0 0
        %860 = vmatmul.mubr.bf16.gmra.mrb[0].mxu0 %v825
        %v861 = vpop.f32.mrb[0].mxu0
        %v862 = vadd.f32 0.0, %v861
        %v863 = vpop.f32.mrb[0].mxu0
        %v864 = vpop.f32.mrb[0].mxu0
        %v865 = vadd.f32 0.0, %v864
        %v866 = vpop.f32.mrb[0].mxu0
        %867 = vdwg.mxu0
        %v870 = vunpack.c.l.b16 %v452
        %v871 = vunpack.c.l.b16 %v453
        %v872 = vpack.c.b16 %v871, %v870
        %v875 = vsel %vm561, %v690, 0
        %877 = vmatprep.subr.bf16.mxu0 0
        %878 = vmatpush1.bf16.msra.mxu0 %v872
        %879 = vmatprep.subr.bf16.mxu0 0
        %880 = vmatpush1.bf16.msra.mxu0 0
        %881 = vmatprep.subr.bf16.mxu0 0
        %882 = vmatpush1.bf16.msra.mxu0 0
        %883 = vmatprep.subr.bf16.mxu0 0
        %884 = vmatpush1.bf16.msra.mxu0 0
        %885 = vmatprep.subr.bf16.mxu0 0
        %886 = vmatpush1.bf16.msra.mxu0 0
        %887 = vmatprep.subr.bf16.mxu0 0
        %888 = vmatpush1.bf16.msra.mxu0 0
        %889 = vmatprep.subr.bf16.mxu0 0
        %890 = vmatpush1.bf16.msra.mxu0 0
        %891 = vmatprep.subr.bf16.mxu0 0
        %892 = vmatpush1.bf16.msra.mxu0 0
        %893 = vmatprep.subr.bf16.mxu0 0
        %894 = vmatpush1.bf16.msra.mxu0 0
        %895 = vmatprep.subr.bf16.mxu0 0
        %896 = vmatpush1.bf16.msra.mxu0 0
        %897 = vmatprep.subr.bf16.mxu0 0
        %898 = vmatpush1.bf16.msra.mxu0 0
        %899 = vmatprep.subr.bf16.mxu0 0
        %900 = vmatpush1.bf16.msra.mxu0 0
        %901 = vmatprep.subr.bf16.mxu0 0
        %902 = vmatpush1.bf16.msra.mxu0 0
        %903 = vmatprep.subr.bf16.mxu0 0
        %904 = vmatpush1.bf16.msra.mxu0 0
        %905 = vmatprep.subr.bf16.mxu0 0
        %906 = vmatpush1.bf16.msra.mxu0 0
        %907 = vmatprep.subr.bf16.mxu0 0
        %908 = vmatpush1.bf16.msra.mxu0 0
        %909 = vmatprep.mubr.bf16.mxu0 0
        %910 = vmatmul.mubr.bf16.gmra.mrb[0].mxu0 %v875
        %v911 = vpop.f32.mrb[0].mxu0
        %v912 = vadd.f32 %v862, %v911
        %v913 = vpop.f32.mrb[0].mxu0
        %v914 = vpop.f32.mrb[0].mxu0
        %v915 = vadd.f32 %v865, %v914
        %v916 = vpop.f32.mrb[0].mxu0
        %917 = vdwg.mxu0
        %v918 = vlaneseq
        %v919 = vshrl.u32 %v918, 7
        %v920 = vsub.s32 3, %v919
        %v921 = vrot.slane %v450, %v920
        %v922 = vadd.f32 %v912, %v921
        %v923 = vadd.f32 %v915, %v921
        %v924 = vadd.f32 %v464, %v922
        %v925 = vadd.f32 %v465, %v923
        %v926 = vsel %vm483, %v924, 0.0
        %927 = vadd.xlane.f32.xlu0 %v926
        %v928 = vpop.xlane.xlu0 %927
        %v929 = vsel %vm483, %v925, 0.0
        %930 = vadd.xlane.f32.xlu0 %v929
        %v931 = vpop.xlane.xlu0 %930
        %v932 = vrcp.pop 32.0
        %v933 = vmul.f32 %v928, %v932
        %v934 = vmul.f32 %v931, %v932
        %v935 = vsub.f32 %v924, %v933
        %v936 = vsub.f32 %v925, %v934
        %v937 = vmul.f32 %v935, %v935
        %v938 = vmul.f32 %v936, %v936
        %v939 = vsel %vm483, %v937, 0.0
        %940 = vadd.xlane.f32.xlu0 %v939
        %v941 = vpop.xlane.xlu0 %940
        %v942 = vsel %vm483, %v938, 0.0
        %943 = vadd.xlane.f32.xlu0 %v942
        %v944 = vpop.xlane.xlu0 %943
        %v945 = vmul.f32 %v941, %v932
        %v946 = vmul.f32 %v944, %v932
        %v947 = vadd.f32 %v945, 1e-05
        %v948 = vadd.f32 %v946, 1e-05
        %v949 = vrsqrt.pop %v947
        %v950 = vrsqrt.pop %v948
        %v951 = vmul.f32 %v935, %v949
        %v952 = vmul.f32 %v936, %v950
        %v953 = vlaneseq
        %v954 = vshrl.u32 %v953, 7
        %v955 = vsub.s32 6, %v954
        %v956 = vrot.slane %v450, %v955
        %v957 = vmul.f32 %v951, %v956
        %v958 = vmul.f32 %v952, %v956
        %v959 = vlaneseq
        %v960 = vshrl.u32 %v959, 7
        %v961 = vsub.s32 7, %v960
        %v962 = vrot.slane %v450, %v961
        %v963 = vadd.f32 %v957, %v962
        %v964 = vadd.f32 %v958, %v962
        %v965 = vpack.c.bf16 %v964, %v963
        %v966 = vlaneseq
        %v967 = vshrl.u32 %v966, 7
        %v968 = vsub.s32 4, %v967
        %v969 = vrot.slane %v450, %v968
        %v974 = vunpack.c.l.b16 %v456
        %v975 = vunpack.c.l.b16 %v457
        %v976 = vunpack.c.l.b16 %v458
        %v977 = vunpack.c.l.b16 %v459
        %v978 = vpack.c.b16 %v975, %v974
        %v979 = vpack.c.b16 %v977, %v976
        %v983 = vsel %vm483, %v965, 0
        %985 = vmatprep.subr.bf16.mxu0 0
        %986 = vmatpush1.bf16.msra.mxu0 %v978
        %987 = vmatprep.subr.bf16.mxu0 0
        %988 = vmatpush1.bf16.msra.mxu0 %v979
        %989 = vmatprep.subr.bf16.mxu0 0
        %990 = vmatpush1.bf16.msra.mxu0 0
        %991 = vmatprep.subr.bf16.mxu0 0
        %992 = vmatpush1.bf16.msra.mxu0 0
        %993 = vmatprep.subr.bf16.mxu0 0
        %994 = vmatpush1.bf16.msra.mxu0 0
        %995 = vmatprep.subr.bf16.mxu0 0
        %996 = vmatpush1.bf16.msra.mxu0 0
        %997 = vmatprep.subr.bf16.mxu0 0
        %998 = vmatpush1.bf16.msra.mxu0 0
        %999 = vmatprep.subr.bf16.mxu0 0
        %1000 = vmatpush1.bf16.msra.mxu0 0
        %1001 = vmatprep.subr.bf16.mxu0 0
        %1002 = vmatpush1.bf16.msra.mxu0 0
        %1003 = vmatprep.subr.bf16.mxu0 0
        %1004 = vmatpush1.bf16.msra.mxu0 0
        %1005 = vmatprep.subr.bf16.mxu0 0
        %1006 = vmatpush1.bf16.msra.mxu0 0
        %1007 = vmatprep.subr.bf16.mxu0 0
        %1008 = vmatpush1.bf16.msra.mxu0 0
        %1009 = vmatprep.subr.bf16.mxu0 0
        %1010 = vmatpush1.bf16.msra.mxu0 0
        %1011 = vmatprep.subr.bf16.mxu0 0
        %1012 = vmatpush1.bf16.msra.mxu0 0
        %1013 = vmatprep.subr.bf16.mxu0 0
        %1014 = vmatpush1.bf16.msra.mxu0 0
        %1015 = vmatprep.subr.bf16.mxu0 0
        %1016 = vmatpush1.bf16.msra.mxu0 0
        %1017 = vmatprep.mubr.bf16.mxu0 0
        %1018 = vmatmul.mubr.bf16.gmra.mrb[0].mxu0 %v983
        %v1019 = vpop.f32.mrb[0].mxu0
        %v1020 = vadd.f32 %v969, %v1019
        %v1021 = vpop.f32.mrb[0].mxu0
        %v1022 = vpop.f32.mrb[0].mxu0
        %v1023 = vadd.f32 %v969, %v1022
        %v1024 = vpop.f32.mrb[0].mxu0
        %1025 = vdwg.mxu0
        %v1026 = vmax.f32 %v1020, 0.0
        %v1027 = vmax.f32 %v1023, 0.0
        %v1028 = vpack.c.bf16 %v1027, %v1026
        %v1029 = vlaneseq
        %v1030 = vshrl.u32 %v1029, 7
        %v1031 = vsub.s32 5, %v1030
        %v1032 = vrot.slane %v450, %v1031
        %v1037 = vunpack.c.l.b16 %v460
        %v1038 = vunpack.c.l.b16 %v461
        %v1039 = vunpack.c.l.b16 %v462
        %v1040 = vunpack.c.l.b16 %v463
        %v1041 = vpack.c.b16 %v1038, %v1037
        %v1042 = vpack.c.b16 %v1040, %v1039
        %v1046 = vsel %vm483, %v1028, 0
        %1048 = vmatprep.subr.bf16.mxu0 0
        %1049 = vmatpush1.bf16.msra.mxu0 %v1041
        %1050 = vmatprep.subr.bf16.mxu0 0
        %1051 = vmatpush1.bf16.msra.mxu0 %v1042
        %1052 = vmatprep.subr.bf16.mxu0 0
        %1053 = vmatpush1.bf16.msra.mxu0 0
        %1054 = vmatprep.subr.bf16.mxu0 0
        %1055 = vmatpush1.bf16.msra.mxu0 0
        %1056 = vmatprep.subr.bf16.mxu0 0
        %1057 = vmatpush1.bf16.msra.mxu0 0
        %1058 = vmatprep.subr.bf16.mxu0 0
        %1059 = vmatpush1.bf16.msra.mxu0 0
        %1060 = vmatprep.subr.bf16.mxu0 0
        %1061 = vmatpush1.bf16.msra.mxu0 0
        %1062 = vmatprep.subr.bf16.mxu0 0
        %1063 = vmatpush1.bf16.msra.mxu0 0
        %1064 = vmatprep.subr.bf16.mxu0 0
        %1065 = vmatpush1.bf16.msra.mxu0 0
        %1066 = vmatprep.subr.bf16.mxu0 0
        %1067 = vmatpush1.bf16.msra.mxu0 0
        %1068 = vmatprep.subr.bf16.mxu0 0
        %1069 = vmatpush1.bf16.msra.mxu0 0
        %1070 = vmatprep.subr.bf16.mxu0 0
        %1071 = vmatpush1.bf16.msra.mxu0 0
        %1072 = vmatprep.subr.bf16.mxu0 0
        %1073 = vmatpush1.bf16.msra.mxu0 0
        %1074 = vmatprep.subr.bf16.mxu0 0
        %1075 = vmatpush1.bf16.msra.mxu0 0
        %1076 = vmatprep.subr.bf16.mxu0 0
        %1077 = vmatpush1.bf16.msra.mxu0 0
        %1078 = vmatprep.subr.bf16.mxu0 0
        %1079 = vmatpush1.bf16.msra.mxu0 0
        %1080 = vmatprep.mubr.bf16.mxu0 0
        %1081 = vmatmul.mubr.bf16.gmra.mrb[0].mxu0 %v1046
        %v1082 = vpop.f32.mrb[0].mxu0
        %v1083 = vadd.f32 %v1032, %v1082
        %v1084 = vpop.f32.mrb[0].mxu0
        %v1085 = vpop.f32.mrb[0].mxu0
        %v1086 = vadd.f32 %v1032, %v1085
        %v1087 = vpop.f32.mrb[0].mxu0
        %1088 = vdwg.mxu0
        %v1089 = vadd.f32 %v963, %v1083
        %v1090 = vadd.f32 %v964, %v1086
        %v1091 = vsel %vm483, %v1089, 0.0
        %1092 = vadd.xlane.f32.xlu0 %v1091
        %v1093 = vpop.xlane.xlu0 %1092
        %v1094 = vsel %vm483, %v1090, 0.0
        %1095 = vadd.xlane.f32.xlu0 %v1094
        %v1096 = vpop.xlane.xlu0 %1095
        %v1097 = vmul.f32 %v1093, %v932
        %v1098 = vmul.f32 %v1096, %v932
        %v1099 = vsub.f32 %v1089, %v1097
        %v1100 = vsub.f32 %v1090, %v1098
        %v1101 = vmul.f32 %v1099, %v1099
        %v1102 = vmul.f32 %v1100, %v1100
        %v1103 = vsel %vm483, %v1101, 0.0
        %1104 = vadd.xlane.f32.xlu0 %v1103
        %v1105 = vpop.xlane.xlu0 %1104
        %v1106 = vsel %vm483, %v1102, 0.0
        %1107 = vadd.xlane.f32.xlu0 %v1106
        %v1108 = vpop.xlane.xlu0 %1107
        %v1109 = vmul.f32 %v1105, %v932
        %v1110 = vmul.f32 %v1108, %v932
        %v1111 = vadd.f32 %v1109, 1e-05
        %v1112 = vadd.f32 %v1110, 1e-05
        %v1113 = vrsqrt.pop %v1111
        %v1114 = vrsqrt.pop %v1112
        %v1115 = vmul.f32 %v1099, %v1113
        %v1116 = vmul.f32 %v1100, %v1114
        %v1117 = vlaneseq
        %v1118 = vshrl.u32 %v1117, 7
        %v1119 = vsub.s32 0, %v1118
        %v1120 = vrot.slane %v451, %v1119
        %v1121 = vmul.f32 %v1115, %v1120
        %v1122 = vmul.f32 %v1116, %v1120
        %v1123 = vlaneseq
        %v1124 = vshrl.u32 %v1123, 7
        %v1125 = vsub.s32 1, %v1124
        %v1126 = vrot.slane %v451, %v1125
        %v1127 = vadd.f32 %v1121, %v1126
        %v1128 = vadd.f32 %v1122, %v1126
        %p1129 = scmp.lt.s32.totalorder %s30, 1
        // Predicated region
        $region61: #{tpu_custom_call.1} parent=51 // pred_check
          %p1130 = pneg %p1129
        $region62: #{tpu_custom_call.1} parent=51 // pred_check_branch
          %1132 = sbr.rel (%p1130) target = $region64
        $region63: #{tpu_custom_call.1} parent=51 // pred_region
          %1133 = vst.msk [vmem:[#allocation2] sm:$0xff] %vm483, %v1127
          %1134 = vst.msk [vmem:[#allocation2 + $0x8] sm:$0xff] %vm483, %v1128
        $region64: #{tpu_custom_call.1} parent=51 // pred_fallthru
          _
        %p1135 = scmp.eq.s32.totalorder %s30, 1
        // Predicated region
        $region65: #{tpu_custom_call.1} parent=51 // pred_check
          %p1136 = pneg %p1135
        $region66: #{tpu_custom_call.1} parent=51 // pred_check_branch
          %1138 = sbr.rel (%p1136) target = $region68
        $region67: #{tpu_custom_call.1} parent=51 // pred_region
          %1139 = vst.msk [vmem:[%s389] sm:$0xff] %vm483, %v1127
          %1140 = vst.msk [vmem:[%s389 + $0x8] sm:$0xff] %vm483, %v1128
        $region68: #{tpu_custom_call.1} parent=51 // pred_fallthru
          _
        %s1141 = sand.u32 %s238, 1
        %s1142 = scalar_lea.sflag [#allocation5], %s1141
        %s1143 = sand.u32 %s238, 1
        %s1144 = smul.addr %s1143, 16
        %s1145 = scalar_lea.vmem [#allocation6], %s1144
        // Predicated region
        $region69: #{tpu_custom_call.1} parent=51 // pred_check
          %p1146 = pneg %p248
        $region70: #{tpu_custom_call.1} parent=51 // pred_check_branch
          %1148 = sbr.rel (%p1146) target = $region72
        $region71: #{tpu_custom_call.1} parent=51 // pred_region
          %s1150 = ssub.s32 256, 256
          %1151 = vsyncadd %s1142, %s1150
          %s1152 = smul.addr %s29, 2
          %s1153 = smul.addr %s1152, 128
          %s1154 = scalar_lea.hbm %s8, %s1153
          %s1155 = sshll.u32 %s1145, 4
          %s1156 = int_to_ptr.vmem [resolvable:$true] %s1155
          %1161 = dma.vmem_to_hbm [thread:$0]  %s1156, 256, %s1154, %s1142, 128, 128, 8
        $region72: #{tpu_custom_call.1} parent=51 // pred_fallthru
          _
      $region52: #{tpu_custom_call.1} parent=5 // pred_fallthru
        _
      %p1162 = scmp.le.s32.totalorder 2, %s20
      // Predicated region
      $region73: #{tpu_custom_call.1} parent=5 // pred_check
        %p1163 = pneg %p1162
      $region74: #{tpu_custom_call.1} parent=5 // pred_check_branch
        %1165 = sbr.rel (%p1163) target = $region76
      $region75: #{tpu_custom_call.1} parent=5 // pred_region
        %s1166 = ssub.s32 %s20, 2
        // Predicated region
        $region77: #{tpu_custom_call.1} parent=75 // pred_check
          %p1167 = pneg %p254
        $region78: #{tpu_custom_call.1} parent=75 // pred_check_branch
          %1169 = sbr.rel (%p1167) target = $region80
        $region79: #{tpu_custom_call.1} parent=75 // pred_region
          %s1170 = sand.u32 %s239, 1
          %s1171 = scalar_lea.sflag [#allocation5], %s1170
          %s1172 = sand.u32 %s239, 1
          %s1173 = smul.addr %s1172, 16
          %s1174 = scalar_lea.vmem [#allocation6], %s1173
          %1175 = dma.done %s1171, 256
        $region80: #{tpu_custom_call.1} parent=75 // pred_fallthru
          _
      $region76: #{tpu_custom_call.1} parent=5 // pred_fallthru
        _
    $region6: #{tpu_custom_call.1} parent=1 // loop_footer
      %s24 = sadd.s32 1, %s20
    $region7: #{tpu_custom_call.1} parent=1 // loop_footer_branch
      %19 = sbr.rel target = $region3
    $region8: #{tpu_custom_call.1} parent=1 // loop_exit
      _
    %1176 = vsyncpa [#allocation4], 1
    %s1177 = scalar_lea.sflag [#allocation4], 1
    %1178 = vsyncpa %s1177, 1
    %1179 = vsyncpa [#allocation5], 1
    %s1180 = scalar_lea.sflag [#allocation5], 1
    %1181 = vsyncpa %s1180, 1

</llo_original>
